<compile_context>
chip_gen: v7x
topology: tpu7x:2x2x1
jax: 0.10.0
libtpu: 0.0.40
codegen_flags: <defaults>
</compile_context>

<pallas_src>
from functools import partial

import jax
import jax.numpy as jnp
from jax import lax
from jax.experimental import pallas as pl
from jax.experimental.pallas import tpu as pltpu


def _basic_sep_conv_kernel(x_ref, w_ref, shift_ref, o_ref, xp_ref, *,
                           K, dilation, padding, relu, unroll):
    """One (batch, channel-tile) block per grid step.

    x_ref:     (TC, H, W)       input channel planes (VMEM, batch squeezed)
    w_ref:     (C*K*K,)         BN-scale-folded depthwise taps (SMEM scalars)
    shift_ref: (C,)             folded BN shift = beta - mean * scale (SMEM)
    o_ref:     (TC, H_out, W_out)
    xp_ref:    (TC, Hp, Wp)     VMEM scratch: zero-padded input plane
    """
    TC, H_out, W_out = o_ref.shape
    H, W = x_ref.shape[1], x_ref.shape[2]
    KK = K * K
    c0 = pl.program_id(1) * TC            # global channel offset of this tile

    # Fused zero-padding: build the padded plane in VMEM (no HBM pad pass).
    if padding > 0:
        xp_ref[...] = jnp.zeros_like(xp_ref)
        xp_ref[:, padding:padding + H, padding:padding + W] = x_ref[...]
        src = xp_ref
    else:
        src = x_ref

    def one_channel(ci):
        plane = src.at[ci]                                  # (Hp, Wp) view
        # BN shift folded into the accumulator init (scale already in taps).
        acc = jnp.full((H_out, W_out), shift_ref[c0 + ci], jnp.float32)
        for ky in range(K):
            y0 = ky * dilation
            # One widened row strip per ky, reused for all kx shifts.
            strip = plane[y0:y0 + H_out, :].astype(jnp.float32)
            for kx in range(K):
                x0 = kx * dilation
                tap = w_ref[(c0 + ci) * KK + ky * K + kx]   # SMEM scalar
                acc = acc + strip[:, x0:x0 + W_out] * tap
        if relu:
            acc = jnp.maximum(acc, 0.0)
        o_ref[ci] = acc.astype(o_ref.dtype)

    if unroll:
        # Small tiles: fully unrolled (best LLO scheduling visibility).
        for ci in range(TC):
            one_channel(ci)
    else:
        # Large tiles: bounded code size, dynamic channel indexing.
        @pl.loop(0, TC)
        def _(ci):
            one_channel(ci)


def basic_sep_conv(x_nchw, conv_w, bn_gamma, bn_beta, bn_mean, bn_var, *,
                   padding=1, dilation=1, eps=1e-5, relu=True,
                   c_tile=None, unroll_channels=None,
                   vmem_budget_bytes=8 * 1024 * 1024):
    """Pallas implementation of BasicSepConv.forward (stride=1, bias=False)."""
    N, C, H, W = x_nchw.shape
    K = conv_w.shape[-1]                        # conv_w: (C, 1, K, K), groups=C
    H_out = H + 2 * padding - dilation * (K - 1)
    W_out = W + 2 * padding - dilation * (K - 1)
    Hp, Wp = H + 2 * padding, W + 2 * padding
    itemsize = jnp.dtype(x_nchw.dtype).itemsize

    # Channel tile from a VMEM budget: big blocks -> few grid steps.
    if c_tile is None:
        per_c = (2 * H * W + 2 * H_out * W_out + Hp * Wp) * itemsize
        c_tile = max(1, int(vmem_budget_bytes // max(per_c, 1)))
    tc = max(1, min(c_tile, C))
    while C % tc != 0:                          # largest divisor of C <= c_tile
        tc -= 1

    if unroll_channels is None:
        unroll_channels = tc <= 8

    # Fold BN (inference) into the weights: w' = w * scale; keep only +shift.
    scale = (bn_gamma / jnp.sqrt(bn_var + eps)).astype(jnp.float32)        # (C,)
    shift = (bn_beta - bn_mean * scale).astype(jnp.float32)                # (C,)
    w_folded = conv_w[:, 0, :, :].astype(jnp.float32) * scale[:, None, None]
    w_flat = w_folded.reshape(-1)                                          # (C*K*K,)

    kernel = partial(_basic_sep_conv_kernel, K=K, dilation=dilation,
                     padding=padding, relu=relu, unroll=unroll_channels)

    pad_scratch = pltpu.VMEM((tc, Hp, Wp) if padding > 0 else (1, 1, 1),
                             x_nchw.dtype)

    out = pl.pallas_call(
        kernel,
        out_shape=jax.ShapeDtypeStruct((N, C, H_out, W_out), x_nchw.dtype),
        grid=(N, C // tc),
        in_specs=[
            pl.BlockSpec((None, tc, H, W), lambda n, c: (n, c, 0, 0)),
            pl.BlockSpec(memory_space=pltpu.MemorySpace.SMEM),   # folded taps
            pl.BlockSpec(memory_space=pltpu.MemorySpace.SMEM),   # BN shift
        ],
        out_specs=pl.BlockSpec((None, tc, H_out, W_out),
                               lambda n, c: (n, c, 0, 0)),
        scratch_shapes=[pad_scratch],
        compiler_params=pltpu.CompilerParams(
            dimension_semantics=("parallel", "parallel"),
            vmem_limit_bytes=32 * 1024 * 1024),
    )(x_nchw, w_flat, shift)

    return out


def _reference(x_nchw, conv_w, bn_gamma, bn_beta, bn_mean, bn_var,
               *, padding=1, dilation=1, eps=1e-5):
    """Pure-JAX reference (depthwise conv via feature_group_count)."""
    C = x_nchw.shape[1]
    y = lax.conv_general_dilated(
        x_nchw, conv_w,
        window_strides=(1, 1),
        padding=((padding, padding), (padding, padding)),
        rhs_dilation=(dilation, dilation),
        dimension_numbers=("NCHW", "OIHW", "NCHW"),
        feature_group_count=C)
    scale = bn_gamma / jnp.sqrt(bn_var + eps)
    shift = bn_beta - bn_mean * scale
    y = y * scale[None, :, None, None] + shift[None, :, None, None]
    return jnp.maximum(y, 0.0)


if __name__ == "__main__":
    key = jax.random.PRNGKey(0)
    k_x, k_w, k_g, k_b, k_m, k_v = jax.random.split(key, 6)

    # Small shapes consistent with BasicSepConv(in_planes, kernel_size=3,
    # stride=1, padding=1) as used in Feature_Fused_SSD_mobile.
    N, C, H, W = 2, 8, 16, 16
    K = 3
    padding, dilation = 1, 1

    x = jax.random.normal(k_x, (N, C, H, W), jnp.float32)
    conv_w = jax.random.normal(k_w, (C, 1, K, K), jnp.float32) * 0.2  # groups=C
    bn_gamma = 1.0 + 0.1 * jax.random.normal(k_g, (C,), jnp.float32)
    bn_beta = 0.1 * jax.random.normal(k_b, (C,), jnp.float32)
    bn_mean = 0.1 * jax.random.normal(k_m, (C,), jnp.float32)
    bn_var = jnp.abs(jax.random.normal(k_v, (C,), jnp.float32)) + 0.5

    ref = _reference(x, conv_w, bn_gamma, bn_beta, bn_mean, bn_var,
                     padding=padding, dilation=dilation)

    # (1) auto channel tile (fully unrolled channel loop).
    out = basic_sep_conv(x, conv_w, bn_gamma, bn_beta, bn_mean, bn_var,
                         padding=padding, dilation=dilation)
    out = jax.block_until_ready(out)
    assert out.shape == (N, C, H, W)
    assert jnp.allclose(out, ref, atol=1e-4, rtol=1e-4)

    # (2) dynamic in-kernel channel loop (pl.loop path used for large tiles).
    out2 = basic_sep_conv(x, conv_w, bn_gamma, bn_beta, bn_mean, bn_var,
                          padding=padding, dilation=dilation,
                          unroll_channels=False)
    out2 = jax.block_until_ready(out2)
    assert jnp.allclose(out2, ref, atol=1e-4, rtol=1e-4)

    print("KERNEL_OK")
</pallas_src>

<mosaic_0001>
module attributes {stable_mosaic.version = 11 : i64} {
  func.func @_basic_sep_conv_kernel(%arg0: i32, %arg1: i32, %arg2: memref<1x8x16x16xf32, #tpu.memory_space<vmem>>, %arg3: memref<72xf32, #tpu.memory_space<smem>>, %arg4: memref<8xf32, #tpu.memory_space<smem>>, %arg5: memref<1x8x16x16xf32, #tpu.memory_space<vmem>>, %arg6: memref<8x18x18xf32, #tpu.memory_space<vmem>>) attributes {dimension_semantics = [#tpu.dimension_semantics<parallel>, #tpu.dimension_semantics<parallel>], iteration_bounds = array<i64: 2, 1>, scalar_prefetch = 0 : i64, scratch_operands = 1 : i64, tpu.core_type = #tpu.core_type<tc>, window_params = [{transform_indices = @transform_0, window_bounds = array<i64: 1, 8, 16, 16>}, {transform_indices = @transform_1, window_bounds = array<i64: 72>}, {transform_indices = @transform_2, window_bounds = array<i64: 8>}, {transform_indices = @transform_3, window_bounds = array<i64: 1, 8, 16, 16>}]} {
    %c8_i32 = arith.constant 8 : i32
    %0 = arith.muli %arg1, %c8_i32 : i32
    %cst = arith.constant 0.000000e+00 : f32
    %1 = vector.broadcast %cst : f32 to vector<8x18x18xf32>
    %c0 = arith.constant 0 : index
    %c0_0 = arith.constant 0 : index
    %c0_1 = arith.constant 0 : index
    %2 = vector.load %arg6[%c0, %c0_0, %c0_1] : memref<8x18x18xf32, #tpu.memory_space<vmem>>, vector<8x18x18xf32>
    tpu.vector_store %arg6[%c0, %c0_0, %c0_1], %1 {strides = array<i32>} : memref<8x18x18xf32, #tpu.memory_space<vmem>>, vector<8x18x18xf32>,
    %c0_2 = arith.constant 0 : index
    %c0_3 = arith.constant 0 : index
    %c0_4 = arith.constant 0 : index
    %c0_5 = arith.constant 0 : index
    %3 = vector.load %arg2[%c0_2, %c0_3, %c0_4, %c0_5] : memref<1x8x16x16xf32, #tpu.memory_space<vmem>>, vector<1x8x16x16xf32>
    %4 = vector.shape_cast %3 : vector<1x8x16x16xf32> to vector<8x16x16xf32>
    %c0_6 = arith.constant 0 : index
    %c1 = arith.constant 1 : index
    %c1_7 = arith.constant 1 : index
    %5 = vector.load %arg6[%c0_6, %c1, %c1_7] : memref<8x18x18xf32, #tpu.memory_space<vmem>>, vector<8x16x16xf32>
    tpu.vector_store %arg6[%c0_6, %c1, %c1_7], %4 {strides = array<i32>} : memref<8x18x18xf32, #tpu.memory_space<vmem>>, vector<8x16x16xf32>,
    %c0_i32 = arith.constant 0 : i32
    %6 = arith.addi %0, %c0_i32 : i32
    %7 = arith.index_cast %6 : i32 to index
    %8 = memref.load %arg4[%7] : memref<8xf32, #tpu.memory_space<smem>>
    %9 = vector.broadcast %8 : f32 to vector<16x16xf32>
    %c0_i32_8 = arith.constant 0 : i32
    %c0_i32_9 = arith.constant 0 : i32
    %c0_i32_10 = arith.constant 0 : i32
    %10 = tpu.memref_slice %arg6[%c0_i32_8, %c0_i32_9, %c0_i32_10] : memref<8x18x18xf32, #tpu.memory_space<vmem>> -> memref<1x18x18xf32, #tpu.memory_space<vmem>>
    %11 = tpu.memref_squeeze %10 : memref<1x18x18xf32, #tpu.memory_space<vmem>> -> memref<18x18xf32, #tpu.memory_space<vmem>>
    %c0_11 = arith.constant 0 : index
    %c0_12 = arith.constant 0 : index
    %12 = vector.load %11[%c0_11, %c0_12] : memref<18x18xf32, #tpu.memory_space<vmem>>, vector<16x18xf32>
    %c0_i32_13 = arith.constant 0 : i32
    %13 = arith.addi %0, %c0_i32_13 : i32
    %c9_i32 = arith.constant 9 : i32
    %14 = arith.muli %13, %c9_i32 : i32
    %c0_i32_14 = arith.constant 0 : i32
    %15 = arith.addi %14, %c0_i32_14 : i32
    %c0_i32_15 = arith.constant 0 : i32
    %16 = arith.addi %15, %c0_i32_15 : i32
    %17 = arith.index_cast %16 : i32 to index
    %18 = memref.load %arg3[%17] : memref<72xf32, #tpu.memory_space<smem>>
    %19 = vector.extract_strided_slice %12 {offsets = [0, 0], sizes = [16, 16], strides = [1, 1]} : vector<16x18xf32> to vector<16x16xf32>
    %20 = vector.broadcast %18 : f32 to vector<16x16xf32>
    %21 = arith.mulf %19, %20 : vector<16x16xf32>
    %22 = arith.addf %9, %21 : vector<16x16xf32>
    %c0_i32_16 = arith.constant 0 : i32
    %23 = arith.addi %0, %c0_i32_16 : i32
    %c9_i32_17 = arith.constant 9 : i32
    %24 = arith.muli %23, %c9_i32_17 : i32
    %c0_i32_18 = arith.constant 0 : i32
    %25 = arith.addi %24, %c0_i32_18 : i32
    %c1_i32 = arith.constant 1 : i32
    %26 = arith.addi %25, %c1_i32 : i32
    %27 = arith.index_cast %26 : i32 to index
    %28 = memref.load %arg3[%27] : memref<72xf32, #tpu.memory_space<smem>>
    %29 = vector.extract_strided_slice %12 {offsets = [0, 1], sizes = [16, 16], strides = [1, 1]} : vector<16x18xf32> to vector<16x16xf32>
    %30 = vector.broadcast %28 : f32 to vector<16x16xf32>
    %31 = arith.mulf %29, %30 : vector<16x16xf32>
    %32 = arith.addf %22, %31 : vector<16x16xf32>
    %c0_i32_19 = arith.constant 0 : i32
    %33 = arith.addi %0, %c0_i32_19 : i32
    %c9_i32_20 = arith.constant 9 : i32
    %34 = arith.muli %33, %c9_i32_20 : i32
    %c0_i32_21 = arith.constant 0 : i32
    %35 = arith.addi %34, %c0_i32_21 : i32
    %c2_i32 = arith.constant 2 : i32
    %36 = arith.addi %35, %c2_i32 : i32
    %37 = arith.index_cast %36 : i32 to index
    %38 = memref.load %arg3[%37] : memref<72xf32, #tpu.memory_space<smem>>
    %39 = vector.extract_strided_slice %12 {offsets = [0, 2], sizes = [16, 16], strides = [1, 1]} : vector<16x18xf32> to vector<16x16xf32>
    %40 = vector.broadcast %38 : f32 to vector<16x16xf32>
    %41 = arith.mulf %39, %40 : vector<16x16xf32>
    %42 = arith.addf %32, %41 : vector<16x16xf32>
    %c0_i32_22 = arith.constant 0 : i32
    %c0_i32_23 = arith.constant 0 : i32
    %c0_i32_24 = arith.constant 0 : i32
    %43 = tpu.memref_slice %arg6[%c0_i32_22, %c0_i32_23, %c0_i32_24] : memref<8x18x18xf32, #tpu.memory_space<vmem>> -> memref<1x18x18xf32, #tpu.memory_space<vmem>>
    %44 = tpu.memref_squeeze %43 : memref<1x18x18xf32, #tpu.memory_space<vmem>> -> memref<18x18xf32, #tpu.memory_space<vmem>>
    %c1_25 = arith.constant 1 : index
    %c0_26 = arith.constant 0 : index
    %45 = vector.load %44[%c1_25, %c0_26] : memref<18x18xf32, #tpu.memory_space<vmem>>, vector<16x18xf32>
    %c0_i32_27 = arith.constant 0 : i32
    %46 = arith.addi %0, %c0_i32_27 : i32
    %c9_i32_28 = arith.constant 9 : i32
    %47 = arith.muli %46, %c9_i32_28 : i32
    %c3_i32 = arith.constant 3 : i32
    %48 = arith.addi %47, %c3_i32 : i32
    %c0_i32_29 = arith.constant 0 : i32
    %49 = arith.addi %48, %c0_i32_29 : i32
    %50 = arith.index_cast %49 : i32 to index
    %51 = memref.load %arg3[%50] : memref<72xf32, #tpu.memory_space<smem>>
    %52 = vector.extract_strided_slice %45 {offsets = [0, 0], sizes = [16, 16], strides = [1, 1]} : vector<16x18xf32> to vector<16x16xf32>
    %53 = vector.broadcast %51 : f32 to vector<16x16xf32>
    %54 = arith.mulf %52, %53 : vector<16x16xf32>
    %55 = arith.addf %42, %54 : vector<16x16xf32>
    %c0_i32_30 = arith.constant 0 : i32
    %56 = arith.addi %0, %c0_i32_30 : i32
    %c9_i32_31 = arith.constant 9 : i32
    %57 = arith.muli %56, %c9_i32_31 : i32
    %c3_i32_32 = arith.constant 3 : i32
    %58 = arith.addi %57, %c3_i32_32 : i32
    %c1_i32_33 = arith.constant 1 : i32
    %59 = arith.addi %58, %c1_i32_33 : i32
    %60 = arith.index_cast %59 : i32 to index
    %61 = memref.load %arg3[%60] : memref<72xf32, #tpu.memory_space<smem>>
    %62 = vector.extract_strided_slice %45 {offsets = [0, 1], sizes = [16, 16], strides = [1, 1]} : vector<16x18xf32> to vector<16x16xf32>
    %63 = vector.broadcast %61 : f32 to vector<16x16xf32>
    %64 = arith.mulf %62, %63 : vector<16x16xf32>
    %65 = arith.addf %55, %64 : vector<16x16xf32>
    %c0_i32_34 = arith.constant 0 : i32
    %66 = arith.addi %0, %c0_i32_34 : i32
    %c9_i32_35 = arith.constant 9 : i32
    %67 = arith.muli %66, %c9_i32_35 : i32
    %c3_i32_36 = arith.constant 3 : i32
    %68 = arith.addi %67, %c3_i32_36 : i32
    %c2_i32_37 = arith.constant 2 : i32
    %69 = arith.addi %68, %c2_i32_37 : i32
    %70 = arith.index_cast %69 : i32 to index
    %71 = memref.load %arg3[%70] : memref<72xf32, #tpu.memory_space<smem>>
    %72 = vector.extract_strided_slice %45 {offsets = [0, 2], sizes = [16, 16], strides = [1, 1]} : vector<16x18xf32> to vector<16x16xf32>
    %73 = vector.broadcast %71 : f32 to vector<16x16xf32>
    %74 = arith.mulf %72, %73 : vector<16x16xf32>
    %75 = arith.addf %65, %74 : vector<16x16xf32>
    %c0_i32_38 = arith.constant 0 : i32
    %c0_i32_39 = arith.constant 0 : i32
    %c0_i32_40 = arith.constant 0 : i32
    %76 = tpu.memref_slice %arg6[%c0_i32_38, %c0_i32_39, %c0_i32_40] : memref<8x18x18xf32, #tpu.memory_space<vmem>> -> memref<1x18x18xf32, #tpu.memory_space<vmem>>
    %77 = tpu.memref_squeeze %76 : memref<1x18x18xf32, #tpu.memory_space<vmem>> -> memref<18x18xf32, #tpu.memory_space<vmem>>
    %c2 = arith.constant 2 : index
    %c0_41 = arith.constant 0 : index
    %78 = vector.load %77[%c2, %c0_41] : memref<18x18xf32, #tpu.memory_space<vmem>>, vector<16x18xf32>
    %c0_i32_42 = arith.constant 0 : i32
    %79 = arith.addi %0, %c0_i32_42 : i32
    %c9_i32_43 = arith.constant 9 : i32
    %80 = arith.muli %79, %c9_i32_43 : i32
    %c6_i32 = arith.constant 6 : i32
    %81 = arith.addi %80, %c6_i32 : i32
    %c0_i32_44 = arith.constant 0 : i32
    %82 = arith.addi %81, %c0_i32_44 : i32
    %83 = arith.index_cast %82 : i32 to index
    %84 = memref.load %arg3[%83] : memref<72xf32, #tpu.memory_space<smem>>
    %85 = vector.extract_strided_slice %78 {offsets = [0, 0], sizes = [16, 16], strides = [1, 1]} : vector<16x18xf32> to vector<16x16xf32>
    %86 = vector.broadcast %84 : f32 to vector<16x16xf32>
    %87 = arith.mulf %85, %86 : vector<16x16xf32>
    %88 = arith.addf %75, %87 : vector<16x16xf32>
    %c0_i32_45 = arith.constant 0 : i32
    %89 = arith.addi %0, %c0_i32_45 : i32
    %c9_i32_46 = arith.constant 9 : i32
    %90 = arith.muli %89, %c9_i32_46 : i32
    %c6_i32_47 = arith.constant 6 : i32
    %91 = arith.addi %90, %c6_i32_47 : i32
    %c1_i32_48 = arith.constant 1 : i32
    %92 = arith.addi %91, %c1_i32_48 : i32
    %93 = arith.index_cast %92 : i32 to index
    %94 = memref.load %arg3[%93] : memref<72xf32, #tpu.memory_space<smem>>
    %95 = vector.extract_strided_slice %78 {offsets = [0, 1], sizes = [16, 16], strides = [1, 1]} : vector<16x18xf32> to vector<16x16xf32>
    %96 = vector.broadcast %94 : f32 to vector<16x16xf32>
    %97 = arith.mulf %95, %96 : vector<16x16xf32>
    %98 = arith.addf %88, %97 : vector<16x16xf32>
    %c0_i32_49 = arith.constant 0 : i32
    %99 = arith.addi %0, %c0_i32_49 : i32
    %c9_i32_50 = arith.constant 9 : i32
    %100 = arith.muli %99, %c9_i32_50 : i32
    %c6_i32_51 = arith.constant 6 : i32
    %101 = arith.addi %100, %c6_i32_51 : i32
    %c2_i32_52 = arith.constant 2 : i32
    %102 = arith.addi %101, %c2_i32_52 : i32
    %103 = arith.index_cast %102 : i32 to index
    %104 = memref.load %arg3[%103] : memref<72xf32, #tpu.memory_space<smem>>
    %105 = vector.extract_strided_slice %78 {offsets = [0, 2], sizes = [16, 16], strides = [1, 1]} : vector<16x18xf32> to vector<16x16xf32>
    %106 = vector.broadcast %104 : f32 to vector<16x16xf32>
    %107 = arith.mulf %105, %106 : vector<16x16xf32>
    %108 = arith.addf %98, %107 : vector<16x16xf32>
    %cst_53 = arith.constant 0.000000e+00 : f32
    %109 = vector.broadcast %cst_53 : f32 to vector<16x16xf32>
    %110 = arith.maximumf %108, %109 : vector<16x16xf32>
    %c0_54 = arith.constant 0 : index
    %c0_55 = arith.constant 0 : index
    %c0_56 = arith.constant 0 : index
    %c0_57 = arith.constant 0 : index
    %111 = vector.load %arg5[%c0_54, %c0_55, %c0_56, %c0_57] : memref<1x8x16x16xf32, #tpu.memory_space<vmem>>, vector<1x1x16x16xf32>
    %112 = vector.shape_cast %111 : vector<1x1x16x16xf32> to vector<16x16xf32>
    %113 = vector.shape_cast %110 : vector<16x16xf32> to vector<1x1x16x16xf32>
    tpu.vector_store %arg5[%c0_54, %c0_55, %c0_56, %c0_57], %113 {strides = array<i32>} : memref<1x8x16x16xf32, #tpu.memory_space<vmem>>, vector<1x1x16x16xf32>,
    %c1_i32_58 = arith.constant 1 : i32
    %114 = arith.addi %0, %c1_i32_58 : i32
    %115 = arith.index_cast %114 : i32 to index
    %116 = memref.load %arg4[%115] : memref<8xf32, #tpu.memory_space<smem>>
    %117 = vector.broadcast %116 : f32 to vector<16x16xf32>
    %c1_i32_59 = arith.constant 1 : i32
    %c0_i32_60 = arith.constant 0 : i32
    %c0_i32_61 = arith.constant 0 : i32
    %118 = tpu.memref_slice %arg6[%c1_i32_59, %c0_i32_60, %c0_i32_61] : memref<8x18x18xf32, #tpu.memory_space<vmem>> -> memref<1x18x18xf32, #tpu.memory_space<vmem>>
    %119 = tpu.memref_squeeze %118 : memref<1x18x18xf32, #tpu.memory_space<vmem>> -> memref<18x18xf32, #tpu.memory_space<vmem>>
    %c0_62 = arith.constant 0 : index
    %c0_63 = arith.constant 0 : index
    %120 = vector.load %119[%c0_62, %c0_63] : memref<18x18xf32, #tpu.memory_space<vmem>>, vector<16x18xf32>
    %c1_i32_64 = arith.constant 1 : i32
    %121 = arith.addi %0, %c1_i32_64 : i32
    %c9_i32_65 = arith.constant 9 : i32
    %122 = arith.muli %121, %c9_i32_65 : i32
    %c0_i32_66 = arith.constant 0 : i32
    %123 = arith.addi %122, %c0_i32_66 : i32
    %c0_i32_67 = arith.constant 0 : i32
    %124 = arith.addi %123, %c0_i32_67 : i32
    %125 = arith.index_cast %124 : i32 to index
    %126 = memref.load %arg3[%125] : memref<72xf32, #tpu.memory_space<smem>>
    %127 = vector.extract_strided_slice %120 {offsets = [0, 0], sizes = [16, 16], strides = [1, 1]} : vector<16x18xf32> to vector<16x16xf32>
    %128 = vector.broadcast %126 : f32 to vector<16x16xf32>
    %129 = arith.mulf %127, %128 : vector<16x16xf32>
    %130 = arith.addf %117, %129 : vector<16x16xf32>
    %c1_i32_68 = arith.constant 1 : i32
    %131 = arith.addi %0, %c1_i32_68 : i32
    %c9_i32_69 = arith.constant 9 : i32
    %132 = arith.muli %131, %c9_i32_69 : i32
    %c0_i32_70 = arith.constant 0 : i32
    %133 = arith.addi %132, %c0_i32_70 : i32
    %c1_i32_71 = arith.constant 1 : i32
    %134 = arith.addi %133, %c1_i32_71 : i32
    %135 = arith.index_cast %134 : i32 to index
    %136 = memref.load %arg3[%135] : memref<72xf32, #tpu.memory_space<smem>>
    %137 = vector.extract_strided_slice %120 {offsets = [0, 1], sizes = [16, 16], strides = [1, 1]} : vector<16x18xf32> to vector<16x16xf32>
    %138 = vector.broadcast %136 : f32 to vector<16x16xf32>
    %139 = arith.mulf %137, %138 : vector<16x16xf32>
    %140 = arith.addf %130, %139 : vector<16x16xf32>
    %c1_i32_72 = arith.constant 1 : i32
    %141 = arith.addi %0, %c1_i32_72 : i32
    %c9_i32_73 = arith.constant 9 : i32
    %142 = arith.muli %141, %c9_i32_73 : i32
    %c0_i32_74 = arith.constant 0 : i32
    %143 = arith.addi %142, %c0_i32_74 : i32
    %c2_i32_75 = arith.constant 2 : i32
    %144 = arith.addi %143, %c2_i32_75 : i32
    %145 = arith.index_cast %144 : i32 to index
    %146 = memref.load %arg3[%145] : memref<72xf32, #tpu.memory_space<smem>>
    %147 = vector.extract_strided_slice %120 {offsets = [0, 2], sizes = [16, 16], strides = [1, 1]} : vector<16x18xf32> to vector<16x16xf32>
    %148 = vector.broadcast %146 : f32 to vector<16x16xf32>
    %149 = arith.mulf %147, %148 : vector<16x16xf32>
    %150 = arith.addf %140, %149 : vector<16x16xf32>
    %c1_i32_76 = arith.constant 1 : i32
    %c0_i32_77 = arith.constant 0 : i32
    %c0_i32_78 = arith.constant 0 : i32
    %151 = tpu.memref_slice %arg6[%c1_i32_76, %c0_i32_77, %c0_i32_78] : memref<8x18x18xf32, #tpu.memory_space<vmem>> -> memref<1x18x18xf32, #tpu.memory_space<vmem>>
    %152 = tpu.memref_squeeze %151 : memref<1x18x18xf32, #tpu.memory_space<vmem>> -> memref<18x18xf32, #tpu.memory_space<vmem>>
    %c1_79 = arith.constant 1 : index
    %c0_80 = arith.constant 0 : index
    %153 = vector.load %152[%c1_79, %c0_80] : memref<18x18xf32, #tpu.memory_space<vmem>>, vector<16x18xf32>
    %c1_i32_81 = arith.constant 1 : i32
    %154 = arith.addi %0, %c1_i32_81 : i32
    %c9_i32_82 = arith.constant 9 : i32
    %155 = arith.muli %154, %c9_i32_82 : i32
    %c3_i32_83 = arith.constant 3 : i32
    %156 = arith.addi %155, %c3_i32_83 : i32
    %c0_i32_84 = arith.constant 0 : i32
    %157 = arith.addi %156, %c0_i32_84 : i32
    %158 = arith.index_cast %157 : i32 to index
    %159 = memref.load %arg3[%158] : memref<72xf32, #tpu.memory_space<smem>>
    %160 = vector.extract_strided_slice %153 {offsets = [0, 0], sizes = [16, 16], strides = [1, 1]} : vector<16x18xf32> to vector<16x16xf32>
    %161 = vector.broadcast %159 : f32 to vector<16x16xf32>
    %162 = arith.mulf %160, %161 : vector<16x16xf32>
    %163 = arith.addf %150, %162 : vector<16x16xf32>
    %c1_i32_85 = arith.constant 1 : i32
    %164 = arith.addi %0, %c1_i32_85 : i32
    %c9_i32_86 = arith.constant 9 : i32
    %165 = arith.muli %164, %c9_i32_86 : i32
    %c3_i32_87 = arith.constant 3 : i32
    %166 = arith.addi %165, %c3_i32_87 : i32
    %c1_i32_88 = arith.constant 1 : i32
    %167 = arith.addi %166, %c1_i32_88 : i32
    %168 = arith.index_cast %167 : i32 to index
    %169 = memref.load %arg3[%168] : memref<72xf32, #tpu.memory_space<smem>>
    %170 = vector.extract_strided_slice %153 {offsets = [0, 1], sizes = [16, 16], strides = [1, 1]} : vector<16x18xf32> to vector<16x16xf32>
    %171 = vector.broadcast %169 : f32 to vector<16x16xf32>
    %172 = arith.mulf %170, %171 : vector<16x16xf32>
    %173 = arith.addf %163, %172 : vector<16x16xf32>
    %c1_i32_89 = arith.constant 1 : i32
    %174 = arith.addi %0, %c1_i32_89 : i32
    %c9_i32_90 = arith.constant 9 : i32
    %175 = arith.muli %174, %c9_i32_90 : i32
    %c3_i32_91 = arith.constant 3 : i32
    %176 = arith.addi %175, %c3_i32_91 : i32
    %c2_i32_92 = arith.constant 2 : i32
    %177 = arith.addi %176, %c2_i32_92 : i32
    %178 = arith.index_cast %177 : i32 to index
    %179 = memref.load %arg3[%178] : memref<72xf32, #tpu.memory_space<smem>>
    %180 = vector.extract_strided_slice %153 {offsets = [0, 2], sizes = [16, 16], strides = [1, 1]} : vector<16x18xf32> to vector<16x16xf32>
    %181 = vector.broadcast %179 : f32 to vector<16x16xf32>
    %182 = arith.mulf %180, %181 : vector<16x16xf32>
    %183 = arith.addf %173, %182 : vector<16x16xf32>
    %c1_i32_93 = arith.constant 1 : i32
    %c0_i32_94 = arith.constant 0 : i32
    %c0_i32_95 = arith.constant 0 : i32
    %184 = tpu.memref_slice %arg6[%c1_i32_93, %c0_i32_94, %c0_i32_95] : memref<8x18x18xf32, #tpu.memory_space<vmem>> -> memref<1x18x18xf32, #tpu.memory_space<vmem>>
    %185 = tpu.memref_squeeze %184 : memref<1x18x18xf32, #tpu.memory_space<vmem>> -> memref<18x18xf32, #tpu.memory_space<vmem>>
    %c2_96 = arith.constant 2 : index
    %c0_97 = arith.constant 0 : index
    %186 = vector.load %185[%c2_96, %c0_97] : memref<18x18xf32, #tpu.memory_space<vmem>>, vector<16x18xf32>
    %c1_i32_98 = arith.constant 1 : i32
    %187 = arith.addi %0, %c1_i32_98 : i32
    %c9_i32_99 = arith.constant 9 : i32
    %188 = arith.muli %187, %c9_i32_99 : i32
    %c6_i32_100 = arith.constant 6 : i32
    %189 = arith.addi %188, %c6_i32_100 : i32
    %c0_i32_101 = arith.constant 0 : i32
    %190 = arith.addi %189, %c0_i32_101 : i32
    %191 = arith.index_cast %190 : i32 to index
    %192 = memref.load %arg3[%191] : memref<72xf32, #tpu.memory_space<smem>>
    %193 = vector.extract_strided_slice %186 {offsets = [0, 0], sizes = [16, 16], strides = [1, 1]} : vector<16x18xf32> to vector<16x16xf32>
    %194 = vector.broadcast %192 : f32 to vector<16x16xf32>
    %195 = arith.mulf %193, %194 : vector<16x16xf32>
    %196 = arith.addf %183, %195 : vector<16x16xf32>
    %c1_i32_102 = arith.constant 1 : i32
    %197 = arith.addi %0, %c1_i32_102 : i32
    %c9_i32_103 = arith.constant 9 : i32
    %198 = arith.muli %197, %c9_i32_103 : i32
    %c6_i32_104 = arith.constant 6 : i32
    %199 = arith.addi %198, %c6_i32_104 : i32
    %c1_i32_105 = arith.constant 1 : i32
    %200 = arith.addi %199, %c1_i32_105 : i32
    %201 = arith.index_cast %200 : i32 to index
    %202 = memref.load %arg3[%201] : memref<72xf32, #tpu.memory_space<smem>>
    %203 = vector.extract_strided_slice %186 {offsets = [0, 1], sizes = [16, 16], strides = [1, 1]} : vector<16x18xf32> to vector<16x16xf32>
    %204 = vector.broadcast %202 : f32 to vector<16x16xf32>
    %205 = arith.mulf %203, %204 : vector<16x16xf32>
    %206 = arith.addf %196, %205 : vector<16x16xf32>
    %c1_i32_106 = arith.constant 1 : i32
    %207 = arith.addi %0, %c1_i32_106 : i32
    %c9_i32_107 = arith.constant 9 : i32
    %208 = arith.muli %207, %c9_i32_107 : i32
    %c6_i32_108 = arith.constant 6 : i32
    %209 = arith.addi %208, %c6_i32_108 : i32
    %c2_i32_109 = arith.constant 2 : i32
    %210 = arith.addi %209, %c2_i32_109 : i32
    %211 = arith.index_cast %210 : i32 to index
    %212 = memref.load %arg3[%211] : memref<72xf32, #tpu.memory_space<smem>>
    %213 = vector.extract_strided_slice %186 {offsets = [0, 2], sizes = [16, 16], strides = [1, 1]} : vector<16x18xf32> to vector<16x16xf32>
    %214 = vector.broadcast %212 : f32 to vector<16x16xf32>
    %215 = arith.mulf %213, %214 : vector<16x16xf32>
    %216 = arith.addf %206, %215 : vector<16x16xf32>
    %cst_110 = arith.constant 0.000000e+00 : f32
    %217 = vector.broadcast %cst_110 : f32 to vector<16x16xf32>
    %218 = arith.maximumf %216, %217 : vector<16x16xf32>
    %c0_111 = arith.constant 0 : index
    %c1_112 = arith.constant 1 : index
    %c0_113 = arith.constant 0 : index
    %c0_114 = arith.constant 0 : index
    %219 = vector.load %arg5[%c0_111, %c1_112, %c0_113, %c0_114] : memref<1x8x16x16xf32, #tpu.memory_space<vmem>>, vector<1x1x16x16xf32>
    %220 = vector.shape_cast %219 : vector<1x1x16x16xf32> to vector<16x16xf32>
    %221 = vector.shape_cast %218 : vector<16x16xf32> to vector<1x1x16x16xf32>
    tpu.vector_store %arg5[%c0_111, %c1_112, %c0_113, %c0_114], %221 {strides = array<i32>} : memref<1x8x16x16xf32, #tpu.memory_space<vmem>>, vector<1x1x16x16xf32>,
    %c2_i32_115 = arith.constant 2 : i32
    %222 = arith.addi %0, %c2_i32_115 : i32
    %223 = arith.index_cast %222 : i32 to index
    %224 = memref.load %arg4[%223] : memref<8xf32, #tpu.memory_space<smem>>
    %225 = vector.broadcast %224 : f32 to vector<16x16xf32>
    %c2_i32_116 = arith.constant 2 : i32
    %c0_i32_117 = arith.constant 0 : i32
    %c0_i32_118 = arith.constant 0 : i32
    %226 = tpu.memref_slice %arg6[%c2_i32_116, %c0_i32_117, %c0_i32_118] : memref<8x18x18xf32, #tpu.memory_space<vmem>> -> memref<1x18x18xf32, #tpu.memory_space<vmem>>
    %227 = tpu.memref_squeeze %226 : memref<1x18x18xf32, #tpu.memory_space<vmem>> -> memref<18x18xf32, #tpu.memory_space<vmem>>
    %c0_119 = arith.constant 0 : index
    %c0_120 = arith.constant 0 : index
    %228 = vector.load %227[%c0_119, %c0_120] : memref<18x18xf32, #tpu.memory_space<vmem>>, vector<16x18xf32>
    %c2_i32_121 = arith.constant 2 : i32
    %229 = arith.addi %0, %c2_i32_121 : i32
    %c9_i32_122 = arith.constant 9 : i32
    %230 = arith.muli %229, %c9_i32_122 : i32
    %c0_i32_123 = arith.constant 0 : i32
    %231 = arith.addi %230, %c0_i32_123 : i32
    %c0_i32_124 = arith.constant 0 : i32
    %232 = arith.addi %231, %c0_i32_124 : i32
    %233 = arith.index_cast %232 : i32 to index
    %234 = memref.load %arg3[%233] : memref<72xf32, #tpu.memory_space<smem>>
    %235 = vector.extract_strided_slice %228 {offsets = [0, 0], sizes = [16, 16], strides = [1, 1]} : vector<16x18xf32> to vector<16x16xf32>
    %236 = vector.broadcast %234 : f32 to vector<16x16xf32>
    %237 = arith.mulf %235, %236 : vector<16x16xf32>
    %238 = arith.addf %225, %237 : vector<16x16xf32>
    %c2_i32_125 = arith.constant 2 : i32
    %239 = arith.addi %0, %c2_i32_125 : i32
    %c9_i32_126 = arith.constant 9 : i32
    %240 = arith.muli %239, %c9_i32_126 : i32
    %c0_i32_127 = arith.constant 0 : i32
    %241 = arith.addi %240, %c0_i32_127 : i32
    %c1_i32_128 = arith.constant 1 : i32
    %242 = arith.addi %241, %c1_i32_128 : i32
    %243 = arith.index_cast %242 : i32 to index
    %244 = memref.load %arg3[%243] : memref<72xf32, #tpu.memory_space<smem>>
    %245 = vector.extract_strided_slice %228 {offsets = [0, 1], sizes = [16, 16], strides = [1, 1]} : vector<16x18xf32> to vector<16x16xf32>
    %246 = vector.broadcast %244 : f32 to vector<16x16xf32>
    %247 = arith.mulf %245, %246 : vector<16x16xf32>
    %248 = arith.addf %238, %247 : vector<16x16xf32>
    %c2_i32_129 = arith.constant 2 : i32
    %249 = arith.addi %0, %c2_i32_129 : i32
    %c9_i32_130 = arith.constant 9 : i32
    %250 = arith.muli %249, %c9_i32_130 : i32
    %c0_i32_131 = arith.constant 0 : i32
    %251 = arith.addi %250, %c0_i32_131 : i32
    %c2_i32_132 = arith.constant 2 : i32
    %252 = arith.addi %251, %c2_i32_132 : i32
    %253 = arith.index_cast %252 : i32 to index
    %254 = memref.load %arg3[%253] : memref<72xf32, #tpu.memory_space<smem>>
    %255 = vector.extract_strided_slice %228 {offsets = [0, 2], sizes = [16, 16], strides = [1, 1]} : vector<16x18xf32> to vector<16x16xf32>
    %256 = vector.broadcast %254 : f32 to vector<16x16xf32>
    %257 = arith.mulf %255, %256 : vector<16x16xf32>
    %258 = arith.addf %248, %257 : vector<16x16xf32>
    %c2_i32_133 = arith.constant 2 : i32
    %c0_i32_134 = arith.constant 0 : i32
    %c0_i32_135 = arith.constant 0 : i32
    %259 = tpu.memref_slice %arg6[%c2_i32_133, %c0_i32_134, %c0_i32_135] : memref<8x18x18xf32, #tpu.memory_space<vmem>> -> memref<1x18x18xf32, #tpu.memory_space<vmem>>
    %260 = tpu.memref_squeeze %259 : memref<1x18x18xf32, #tpu.memory_space<vmem>> -> memref<18x18xf32, #tpu.memory_space<vmem>>
    %c1_136 = arith.constant 1 : index
    %c0_137 = arith.constant 0 : index
    %261 = vector.load %260[%c1_136, %c0_137] : memref<18x18xf32, #tpu.memory_space<vmem>>, vector<16x18xf32>
    %c2_i32_138 = arith.constant 2 : i32
    %262 = arith.addi %0, %c2_i32_138 : i32
    %c9_i32_139 = arith.constant 9 : i32
    %263 = arith.muli %262, %c9_i32_139 : i32
    %c3_i32_140 = arith.constant 3 : i32
    %264 = arith.addi %263, %c3_i32_140 : i32
    %c0_i32_141 = arith.constant 0 : i32
    %265 = arith.addi %264, %c0_i32_141 : i32
    %266 = arith.index_cast %265 : i32 to index
    %267 = memref.load %arg3[%266] : memref<72xf32, #tpu.memory_space<smem>>
    %268 = vector.extract_strided_slice %261 {offsets = [0, 0], sizes = [16, 16], strides = [1, 1]} : vector<16x18xf32> to vector<16x16xf32>
    %269 = vector.broadcast %267 : f32 to vector<16x16xf32>
    %270 = arith.mulf %268, %269 : vector<16x16xf32>
    %271 = arith.addf %258, %270 : vector<16x16xf32>
    %c2_i32_142 = arith.constant 2 : i32
    %272 = arith.addi %0, %c2_i32_142 : i32
    %c9_i32_143 = arith.constant 9 : i32
    %273 = arith.muli %272, %c9_i32_143 : i32
    %c3_i32_144 = arith.constant 3 : i32
    %274 = arith.addi %273, %c3_i32_144 : i32
    %c1_i32_145 = arith.constant 1 : i32
    %275 = arith.addi %274, %c1_i32_145 : i32
    %276 = arith.index_cast %275 : i32 to index
    %277 = memref.load %arg3[%276] : memref<72xf32, #tpu.memory_space<smem>>
    %278 = vector.extract_strided_slice %261 {offsets = [0, 1], sizes = [16, 16], strides = [1, 1]} : vector<16x18xf32> to vector<16x16xf32>
    %279 = vector.broadcast %277 : f32 to vector<16x16xf32>
    %280 = arith.mulf %278, %279 : vector<16x16xf32>
    %281 = arith.addf %271, %280 : vector<16x16xf32>
    %c2_i32_146 = arith.constant 2 : i32
    %282 = arith.addi %0, %c2_i32_146 : i32
    %c9_i32_147 = arith.constant 9 : i32
    %283 = arith.muli %282, %c9_i32_147 : i32
    %c3_i32_148 = arith.constant 3 : i32
    %284 = arith.addi %283, %c3_i32_148 : i32
    %c2_i32_149 = arith.constant 2 : i32
    %285 = arith.addi %284, %c2_i32_149 : i32
    %286 = arith.index_cast %285 : i32 to index
    %287 = memref.load %arg3[%286] : memref<72xf32, #tpu.memory_space<smem>>
    %288 = vector.extract_strided_slice %261 {offsets = [0, 2], sizes = [16, 16], strides = [1, 1]} : vector<16x18xf32> to vector<16x16xf32>
    %289 = vector.broadcast %287 : f32 to vector<16x16xf32>
    %290 = arith.mulf %288, %289 : vector<16x16xf32>
    %291 = arith.addf %281, %290 : vector<16x16xf32>
    %c2_i32_150 = arith.constant 2 : i32
    %c0_i32_151 = arith.constant 0 : i32
    %c0_i32_152 = arith.constant 0 : i32
    %292 = tpu.memref_slice %arg6[%c2_i32_150, %c0_i32_151, %c0_i32_152] : memref<8x18x18xf32, #tpu.memory_space<vmem>> -> memref<1x18x18xf32, #tpu.memory_space<vmem>>
    %293 = tpu.memref_squeeze %292 : memref<1x18x18xf32, #tpu.memory_space<vmem>> -> memref<18x18xf32, #tpu.memory_space<vmem>>
    %c2_153 = arith.constant 2 : index
    %c0_154 = arith.constant 0 : index
    %294 = vector.load %293[%c2_153, %c0_154] : memref<18x18xf32, #tpu.memory_space<vmem>>, vector<16x18xf32>
    %c2_i32_155 = arith.constant 2 : i32
    %295 = arith.addi %0, %c2_i32_155 : i32
    %c9_i32_156 = arith.constant 9 : i32
    %296 = arith.muli %295, %c9_i32_156 : i32
    %c6_i32_157 = arith.constant 6 : i32
    %297 = arith.addi %296, %c6_i32_157 : i32
    %c0_i32_158 = arith.constant 0 : i32
    %298 = arith.addi %297, %c0_i32_158 : i32
    %299 = arith.index_cast %298 : i32 to index
    %300 = memref.load %arg3[%299] : memref<72xf32, #tpu.memory_space<smem>>
    %301 = vector.extract_strided_slice %294 {offsets = [0, 0], sizes = [16, 16], strides = [1, 1]} : vector<16x18xf32> to vector<16x16xf32>
    %302 = vector.broadcast %300 : f32 to vector<16x16xf32>
    %303 = arith.mulf %301, %302 : vector<16x16xf32>
    %304 = arith.addf %291, %303 : vector<16x16xf32>
    %c2_i32_159 = arith.constant 2 : i32
    %305 = arith.addi %0, %c2_i32_159 : i32
    %c9_i32_160 = arith.constant 9 : i32
    %306 = arith.muli %305, %c9_i32_160 : i32
    %c6_i32_161 = arith.constant 6 : i32
    %307 = arith.addi %306, %c6_i32_161 : i32
    %c1_i32_162 = arith.constant 1 : i32
    %308 = arith.addi %307, %c1_i32_162 : i32
    %309 = arith.index_cast %308 : i32 to index
    %310 = memref.load %arg3[%309] : memref<72xf32, #tpu.memory_space<smem>>
    %311 = vector.extract_strided_slice %294 {offsets = [0, 1], sizes = [16, 16], strides = [1, 1]} : vector<16x18xf32> to vector<16x16xf32>
    %312 = vector.broadcast %310 : f32 to vector<16x16xf32>
    %313 = arith.mulf %311, %312 : vector<16x16xf32>
    %314 = arith.addf %304, %313 : vector<16x16xf32>
    %c2_i32_163 = arith.constant 2 : i32
    %315 = arith.addi %0, %c2_i32_163 : i32
    %c9_i32_164 = arith.constant 9 : i32
    %316 = arith.muli %315, %c9_i32_164 : i32
    %c6_i32_165 = arith.constant 6 : i32
    %317 = arith.addi %316, %c6_i32_165 : i32
    %c2_i32_166 = arith.constant 2 : i32
    %318 = arith.addi %317, %c2_i32_166 : i32
    %319 = arith.index_cast %318 : i32 to index
    %320 = memref.load %arg3[%319] : memref<72xf32, #tpu.memory_space<smem>>
    %321 = vector.extract_strided_slice %294 {offsets = [0, 2], sizes = [16, 16], strides = [1, 1]} : vector<16x18xf32> to vector<16x16xf32>
    %322 = vector.broadcast %320 : f32 to vector<16x16xf32>
    %323 = arith.mulf %321, %322 : vector<16x16xf32>
    %324 = arith.addf %314, %323 : vector<16x16xf32>
    %cst_167 = arith.constant 0.000000e+00 : f32
    %325 = vector.broadcast %cst_167 : f32 to vector<16x16xf32>
    %326 = arith.maximumf %324, %325 : vector<16x16xf32>
    %c0_168 = arith.constant 0 : index
    %c2_169 = arith.constant 2 : index
    %c0_170 = arith.constant 0 : index
    %c0_171 = arith.constant 0 : index
    %327 = vector.load %arg5[%c0_168, %c2_169, %c0_170, %c0_171] : memref<1x8x16x16xf32, #tpu.memory_space<vmem>>, vector<1x1x16x16xf32>
    %328 = vector.shape_cast %327 : vector<1x1x16x16xf32> to vector<16x16xf32>
    %329 = vector.shape_cast %326 : vector<16x16xf32> to vector<1x1x16x16xf32>
    tpu.vector_store %arg5[%c0_168, %c2_169, %c0_170, %c0_171], %329 {strides = array<i32>} : memref<1x8x16x16xf32, #tpu.memory_space<vmem>>, vector<1x1x16x16xf32>,
    %c3_i32_172 = arith.constant 3 : i32
    %330 = arith.addi %0, %c3_i32_172 : i32
    %331 = arith.index_cast %330 : i32 to index
    %332 = memref.load %arg4[%331] : memref<8xf32, #tpu.memory_space<smem>>
    %333 = vector.broadcast %332 : f32 to vector<16x16xf32>
    %c3_i32_173 = arith.constant 3 : i32
    %c0_i32_174 = arith.constant 0 : i32
    %c0_i32_175 = arith.constant 0 : i32
    %334 = tpu.memref_slice %arg6[%c3_i32_173, %c0_i32_174, %c0_i32_175] : memref<8x18x18xf32, #tpu.memory_space<vmem>> -> memref<1x18x18xf32, #tpu.memory_space<vmem>>
    %335 = tpu.memref_squeeze %334 : memref<1x18x18xf32, #tpu.memory_space<vmem>> -> memref<18x18xf32, #tpu.memory_space<vmem>>
    %c0_176 = arith.constant 0 : index
    %c0_177 = arith.constant 0 : index
    %336 = vector.load %335[%c0_176, %c0_177] : memref<18x18xf32, #tpu.memory_space<vmem>>, vector<16x18xf32>
    %c3_i32_178 = arith.constant 3 : i32
    %337 = arith.addi %0, %c3_i32_178 : i32
    %c9_i32_179 = arith.constant 9 : i32
    %338 = arith.muli %337, %c9_i32_179 : i32
    %c0_i32_180 = arith.constant 0 : i32
    %339 = arith.addi %338, %c0_i32_180 : i32
    %c0_i32_181 = arith.constant 0 : i32
    %340 = arith.addi %339, %c0_i32_181 : i32
    %341 = arith.index_cast %340 : i32 to index
    %342 = memref.load %arg3[%341] : memref<72xf32, #tpu.memory_space<smem>>
    %343 = vector.extract_strided_slice %336 {offsets = [0, 0], sizes = [16, 16], strides = [1, 1]} : vector<16x18xf32> to vector<16x16xf32>
    %344 = vector.broadcast %342 : f32 to vector<16x16xf32>
    %345 = arith.mulf %343, %344 : vector<16x16xf32>
    %346 = arith.addf %333, %345 : vector<16x16xf32>
    %c3_i32_182 = arith.constant 3 : i32
    %347 = arith.addi %0, %c3_i32_182 : i32
    %c9_i32_183 = arith.constant 9 : i32
    %348 = arith.muli %347, %c9_i32_183 : i32
    %c0_i32_184 = arith.constant 0 : i32
    %349 = arith.addi %348, %c0_i32_184 : i32
    %c1_i32_185 = arith.constant 1 : i32
    %350 = arith.addi %349, %c1_i32_185 : i32
    %351 = arith.index_cast %350 : i32 to index
    %352 = memref.load %arg3[%351] : memref<72xf32, #tpu.memory_space<smem>>
    %353 = vector.extract_strided_slice %336 {offsets = [0, 1], sizes = [16, 16], strides = [1, 1]} : vector<16x18xf32> to vector<16x16xf32>
    %354 = vector.broadcast %352 : f32 to vector<16x16xf32>
    %355 = arith.mulf %353, %354 : vector<16x16xf32>
    %356 = arith.addf %346, %355 : vector<16x16xf32>
    %c3_i32_186 = arith.constant 3 : i32
    %357 = arith.addi %0, %c3_i32_186 : i32
    %c9_i32_187 = arith.constant 9 : i32
    %358 = arith.muli %357, %c9_i32_187 : i32
    %c0_i32_188 = arith.constant 0 : i32
    %359 = arith.addi %358, %c0_i32_188 : i32
    %c2_i32_189 = arith.constant 2 : i32
    %360 = arith.addi %359, %c2_i32_189 : i32
    %361 = arith.index_cast %360 : i32 to index
    %362 = memref.load %arg3[%361] : memref<72xf32, #tpu.memory_space<smem>>
    %363 = vector.extract_strided_slice %336 {offsets = [0, 2], sizes = [16, 16], strides = [1, 1]} : vector<16x18xf32> to vector<16x16xf32>
    %364 = vector.broadcast %362 : f32 to vector<16x16xf32>
    %365 = arith.mulf %363, %364 : vector<16x16xf32>
    %366 = arith.addf %356, %365 : vector<16x16xf32>
    %c3_i32_190 = arith.constant 3 : i32
    %c0_i32_191 = arith.constant 0 : i32
    %c0_i32_192 = arith.constant 0 : i32
    %367 = tpu.memref_slice %arg6[%c3_i32_190, %c0_i32_191, %c0_i32_192] : memref<8x18x18xf32, #tpu.memory_space<vmem>> -> memref<1x18x18xf32, #tpu.memory_space<vmem>>
    %368 = tpu.memref_squeeze %367 : memref<1x18x18xf32, #tpu.memory_space<vmem>> -> memref<18x18xf32, #tpu.memory_space<vmem>>
    %c1_193 = arith.constant 1 : index
    %c0_194 = arith.constant 0 : index
    %369 = vector.load %368[%c1_193, %c0_194] : memref<18x18xf32, #tpu.memory_space<vmem>>, vector<16x18xf32>
    %c3_i32_195 = arith.constant 3 : i32
    %370 = arith.addi %0, %c3_i32_195 : i32
    %c9_i32_196 = arith.constant 9 : i32
    %371 = arith.muli %370, %c9_i32_196 : i32
    %c3_i32_197 = arith.constant 3 : i32
    %372 = arith.addi %371, %c3_i32_197 : i32
    %c0_i32_198 = arith.constant 0 : i32
    %373 = arith.addi %372, %c0_i32_198 : i32
    %374 = arith.index_cast %373 : i32 to index
    %375 = memref.load %arg3[%374] : memref<72xf32, #tpu.memory_space<smem>>
    %376 = vector.extract_strided_slice %369 {offsets = [0, 0], sizes = [16, 16], strides = [1, 1]} : vector<16x18xf32> to vector<16x16xf32>
    %377 = vector.broadcast %375 : f32 to vector<16x16xf32>
    %378 = arith.mulf %376, %377 : vector<16x16xf32>
    %379 = arith.addf %366, %378 : vector<16x16xf32>
    %c3_i32_199 = arith.constant 3 : i32
    %380 = arith.addi %0, %c3_i32_199 : i32
    %c9_i32_200 = arith.constant 9 : i32
    %381 = arith.muli %380, %c9_i32_200 : i32
    %c3_i32_201 = arith.constant 3 : i32
    %382 = arith.addi %381, %c3_i32_201 : i32
    %c1_i32_202 = arith.constant 1 : i32
    %383 = arith.addi %382, %c1_i32_202 : i32
    %384 = arith.index_cast %383 : i32 to index
    %385 = memref.load %arg3[%384] : memref<72xf32, #tpu.memory_space<smem>>
    %386 = vector.extract_strided_slice %369 {offsets = [0, 1], sizes = [16, 16], strides = [1, 1]} : vector<16x18xf32> to vector<16x16xf32>
    %387 = vector.broadcast %385 : f32 to vector<16x16xf32>
    %388 = arith.mulf %386, %387 : vector<16x16xf32>
    %389 = arith.addf %379, %388 : vector<16x16xf32>
    %c3_i32_203 = arith.constant 3 : i32
    %390 = arith.addi %0, %c3_i32_203 : i32
    %c9_i32_204 = arith.constant 9 : i32
    %391 = arith.muli %390, %c9_i32_204 : i32
    %c3_i32_205 = arith.constant 3 : i32
    %392 = arith.addi %391, %c3_i32_205 : i32
    %c2_i32_206 = arith.constant 2 : i32
    %393 = arith.addi %392, %c2_i32_206 : i32
    %394 = arith.index_cast %393 : i32 to index
    %395 = memref.load %arg3[%394] : memref<72xf32, #tpu.memory_space<smem>>
    %396 = vector.extract_strided_slice %369 {offsets = [0, 2], sizes = [16, 16], strides = [1, 1]} : vector<16x18xf32> to vector<16x16xf32>
    %397 = vector.broadcast %395 : f32 to vector<16x16xf32>
    %398 = arith.mulf %396, %397 : vector<16x16xf32>
    %399 = arith.addf %389, %398 : vector<16x16xf32>
    %c3_i32_207 = arith.constant 3 : i32
    %c0_i32_208 = arith.constant 0 : i32
    %c0_i32_209 = arith.constant 0 : i32
    %400 = tpu.memref_slice %arg6[%c3_i32_207, %c0_i32_208, %c0_i32_209] : memref<8x18x18xf32, #tpu.memory_space<vmem>> -> memref<1x18x18xf32, #tpu.memory_space<vmem>>
    %401 = tpu.memref_squeeze %400 : memref<1x18x18xf32, #tpu.memory_space<vmem>> -> memref<18x18xf32, #tpu.memory_space<vmem>>
    %c2_210 = arith.constant 2 : index
    %c0_211 = arith.constant 0 : index
    %402 = vector.load %401[%c2_210, %c0_211] : memref<18x18xf32, #tpu.memory_space<vmem>>, vector<16x18xf32>
    %c3_i32_212 = arith.constant 3 : i32
    %403 = arith.addi %0, %c3_i32_212 : i32
    %c9_i32_213 = arith.constant 9 : i32
    %404 = arith.muli %403, %c9_i32_213 : i32
    %c6_i32_214 = arith.constant 6 : i32
    %405 = arith.addi %404, %c6_i32_214 : i32
    %c0_i32_215 = arith.constant 0 : i32
    %406 = arith.addi %405, %c0_i32_215 : i32
    %407 = arith.index_cast %406 : i32 to index
    %408 = memref.load %arg3[%407] : memref<72xf32, #tpu.memory_space<smem>>
    %409 = vector.extract_strided_slice %402 {offsets = [0, 0], sizes = [16, 16], strides = [1, 1]} : vector<16x18xf32> to vector<16x16xf32>
    %410 = vector.broadcast %408 : f32 to vector<16x16xf32>
    %411 = arith.mulf %409, %410 : vector<16x16xf32>
    %412 = arith.addf %399, %411 : vector<16x16xf32>
    %c3_i32_216 = arith.constant 3 : i32
    %413 = arith.addi %0, %c3_i32_216 : i32
    %c9_i32_217 = arith.constant 9 : i32
    %414 = arith.muli %413, %c9_i32_217 : i32
    %c6_i32_218 = arith.constant 6 : i32
    %415 = arith.addi %414, %c6_i32_218 : i32
    %c1_i32_219 = arith.constant 1 : i32
    %416 = arith.addi %415, %c1_i32_219 : i32
    %417 = arith.index_cast %416 : i32 to index
    %418 = memref.load %arg3[%417] : memref<72xf32, #tpu.memory_space<smem>>
    %419 = vector.extract_strided_slice %402 {offsets = [0, 1], sizes = [16, 16], strides = [1, 1]} : vector<16x18xf32> to vector<16x16xf32>
    %420 = vector.broadcast %418 : f32 to vector<16x16xf32>
    %421 = arith.mulf %419, %420 : vector<16x16xf32>
    %422 = arith.addf %412, %421 : vector<16x16xf32>
    %c3_i32_220 = arith.constant 3 : i32
    %423 = arith.addi %0, %c3_i32_220 : i32
    %c9_i32_221 = arith.constant 9 : i32
    %424 = arith.muli %423, %c9_i32_221 : i32
    %c6_i32_222 = arith.constant 6 : i32
    %425 = arith.addi %424, %c6_i32_222 : i32
    %c2_i32_223 = arith.constant 2 : i32
    %426 = arith.addi %425, %c2_i32_223 : i32
    %427 = arith.index_cast %426 : i32 to index
    %428 = memref.load %arg3[%427] : memref<72xf32, #tpu.memory_space<smem>>
    %429 = vector.extract_strided_slice %402 {offsets = [0, 2], sizes = [16, 16], strides = [1, 1]} : vector<16x18xf32> to vector<16x16xf32>
    %430 = vector.broadcast %428 : f32 to vector<16x16xf32>
    %431 = arith.mulf %429, %430 : vector<16x16xf32>
    %432 = arith.addf %422, %431 : vector<16x16xf32>
    %cst_224 = arith.constant 0.000000e+00 : f32
    %433 = vector.broadcast %cst_224 : f32 to vector<16x16xf32>
    %434 = arith.maximumf %432, %433 : vector<16x16xf32>
    %c0_225 = arith.constant 0 : index
    %c3 = arith.constant 3 : index
    %c0_226 = arith.constant 0 : index
    %c0_227 = arith.constant 0 : index
    %435 = vector.load %arg5[%c0_225, %c3, %c0_226, %c0_227] : memref<1x8x16x16xf32, #tpu.memory_space<vmem>>, vector<1x1x16x16xf32>
    %436 = vector.shape_cast %435 : vector<1x1x16x16xf32> to vector<16x16xf32>
    %437 = vector.shape_cast %434 : vector<16x16xf32> to vector<1x1x16x16xf32>
    tpu.vector_store %arg5[%c0_225, %c3, %c0_226, %c0_227], %437 {strides = array<i32>} : memref<1x8x16x16xf32, #tpu.memory_space<vmem>>, vector<1x1x16x16xf32>,
    %c4_i32 = arith.constant 4 : i32
    %438 = arith.addi %0, %c4_i32 : i32
    %439 = arith.index_cast %438 : i32 to index
    %440 = memref.load %arg4[%439] : memref<8xf32, #tpu.memory_space<smem>>
    %441 = vector.broadcast %440 : f32 to vector<16x16xf32>
    %c4_i32_228 = arith.constant 4 : i32
    %c0_i32_229 = arith.constant 0 : i32
    %c0_i32_230 = arith.constant 0 : i32
    %442 = tpu.memref_slice %arg6[%c4_i32_228, %c0_i32_229, %c0_i32_230] : memref<8x18x18xf32, #tpu.memory_space<vmem>> -> memref<1x18x18xf32, #tpu.memory_space<vmem>>
    %443 = tpu.memref_squeeze %442 : memref<1x18x18xf32, #tpu.memory_space<vmem>> -> memref<18x18xf32, #tpu.memory_space<vmem>>
    %c0_231 = arith.constant 0 : index
    %c0_232 = arith.constant 0 : index
    %444 = vector.load %443[%c0_231, %c0_232] : memref<18x18xf32, #tpu.memory_space<vmem>>, vector<16x18xf32>
    %c4_i32_233 = arith.constant 4 : i32
    %445 = arith.addi %0, %c4_i32_233 : i32
    %c9_i32_234 = arith.constant 9 : i32
    %446 = arith.muli %445, %c9_i32_234 : i32
    %c0_i32_235 = arith.constant 0 : i32
    %447 = arith.addi %446, %c0_i32_235 : i32
    %c0_i32_236 = arith.constant 0 : i32
    %448 = arith.addi %447, %c0_i32_236 : i32
    %449 = arith.index_cast %448 : i32 to index
    %450 = memref.load %arg3[%449] : memref<72xf32, #tpu.memory_space<smem>>
    %451 = vector.extract_strided_slice %444 {offsets = [0, 0], sizes = [16, 16], strides = [1, 1]} : vector<16x18xf32> to vector<16x16xf32>
    %452 = vector.broadcast %450 : f32 to vector<16x16xf32>
    %453 = arith.mulf %451, %452 : vector<16x16xf32>
    %454 = arith.addf %441, %453 : vector<16x16xf32>
    %c4_i32_237 = arith.constant 4 : i32
    %455 = arith.addi %0, %c4_i32_237 : i32
    %c9_i32_238 = arith.constant 9 : i32
    %456 = arith.muli %455, %c9_i32_238 : i32
    %c0_i32_239 = arith.constant 0 : i32
    %457 = arith.addi %456, %c0_i32_239 : i32
    %c1_i32_240 = arith.constant 1 : i32
    %458 = arith.addi %457, %c1_i32_240 : i32
    %459 = arith.index_cast %458 : i32 to index
    %460 = memref.load %arg3[%459] : memref<72xf32, #tpu.memory_space<smem>>
    %461 = vector.extract_strided_slice %444 {offsets = [0, 1], sizes = [16, 16], strides = [1, 1]} : vector<16x18xf32> to vector<16x16xf32>
    %462 = vector.broadcast %460 : f32 to vector<16x16xf32>
    %463 = arith.mulf %461, %462 : vector<16x16xf32>
    %464 = arith.addf %454, %463 : vector<16x16xf32>
    %c4_i32_241 = arith.constant 4 : i32
    %465 = arith.addi %0, %c4_i32_241 : i32
    %c9_i32_242 = arith.constant 9 : i32
    %466 = arith.muli %465, %c9_i32_242 : i32
    %c0_i32_243 = arith.constant 0 : i32
    %467 = arith.addi %466, %c0_i32_243 : i32
    %c2_i32_244 = arith.constant 2 : i32
    %468 = arith.addi %467, %c2_i32_244 : i32
    %469 = arith.index_cast %468 : i32 to index
    %470 = memref.load %arg3[%469] : memref<72xf32, #tpu.memory_space<smem>>
    %471 = vector.extract_strided_slice %444 {offsets = [0, 2], sizes = [16, 16], strides = [1, 1]} : vector<16x18xf32> to vector<16x16xf32>
    %472 = vector.broadcast %470 : f32 to vector<16x16xf32>
    %473 = arith.mulf %471, %472 : vector<16x16xf32>
    %474 = arith.addf %464, %473 : vector<16x16xf32>
    %c4_i32_245 = arith.constant 4 : i32
    %c0_i32_246 = arith.constant 0 : i32
    %c0_i32_247 = arith.constant 0 : i32
    %475 = tpu.memref_slice %arg6[%c4_i32_245, %c0_i32_246, %c0_i32_247] : memref<8x18x18xf32, #tpu.memory_space<vmem>> -> memref<1x18x18xf32, #tpu.memory_space<vmem>>
    %476 = tpu.memref_squeeze %475 : memref<1x18x18xf32, #tpu.memory_space<vmem>> -> memref<18x18xf32, #tpu.memory_space<vmem>>
    %c1_248 = arith.constant 1 : index
    %c0_249 = arith.constant 0 : index
    %477 = vector.load %476[%c1_248, %c0_249] : memref<18x18xf32, #tpu.memory_space<vmem>>, vector<16x18xf32>
    %c4_i32_250 = arith.constant 4 : i32
    %478 = arith.addi %0, %c4_i32_250 : i32
    %c9_i32_251 = arith.constant 9 : i32
    %479 = arith.muli %478, %c9_i32_251 : i32
    %c3_i32_252 = arith.constant 3 : i32
    %480 = arith.addi %479, %c3_i32_252 : i32
    %c0_i32_253 = arith.constant 0 : i32
    %481 = arith.addi %480, %c0_i32_253 : i32
    %482 = arith.index_cast %481 : i32 to index
    %483 = memref.load %arg3[%482] : memref<72xf32, #tpu.memory_space<smem>>
    %484 = vector.extract_strided_slice %477 {offsets = [0, 0], sizes = [16, 16], strides = [1, 1]} : vector<16x18xf32> to vector<16x16xf32>
    %485 = vector.broadcast %483 : f32 to vector<16x16xf32>
    %486 = arith.mulf %484, %485 : vector<16x16xf32>
    %487 = arith.addf %474, %486 : vector<16x16xf32>
    %c4_i32_254 = arith.constant 4 : i32
    %488 = arith.addi %0, %c4_i32_254 : i32
    %c9_i32_255 = arith.constant 9 : i32
    %489 = arith.muli %488, %c9_i32_255 : i32
    %c3_i32_256 = arith.constant 3 : i32
    %490 = arith.addi %489, %c3_i32_256 : i32
    %c1_i32_257 = arith.constant 1 : i32
    %491 = arith.addi %490, %c1_i32_257 : i32
    %492 = arith.index_cast %491 : i32 to index
    %493 = memref.load %arg3[%492] : memref<72xf32, #tpu.memory_space<smem>>
    %494 = vector.extract_strided_slice %477 {offsets = [0, 1], sizes = [16, 16], strides = [1, 1]} : vector<16x18xf32> to vector<16x16xf32>
    %495 = vector.broadcast %493 : f32 to vector<16x16xf32>
    %496 = arith.mulf %494, %495 : vector<16x16xf32>
    %497 = arith.addf %487, %496 : vector<16x16xf32>
    %c4_i32_258 = arith.constant 4 : i32
    %498 = arith.addi %0, %c4_i32_258 : i32
    %c9_i32_259 = arith.constant 9 : i32
    %499 = arith.muli %498, %c9_i32_259 : i32
    %c3_i32_260 = arith.constant 3 : i32
    %500 = arith.addi %499, %c3_i32_260 : i32
    %c2_i32_261 = arith.constant 2 : i32
    %501 = arith.addi %500, %c2_i32_261 : i32
    %502 = arith.index_cast %501 : i32 to index
    %503 = memref.load %arg3[%502] : memref<72xf32, #tpu.memory_space<smem>>
    %504 = vector.extract_strided_slice %477 {offsets = [0, 2], sizes = [16, 16], strides = [1, 1]} : vector<16x18xf32> to vector<16x16xf32>
    %505 = vector.broadcast %503 : f32 to vector<16x16xf32>
    %506 = arith.mulf %504, %505 : vector<16x16xf32>
    %507 = arith.addf %497, %506 : vector<16x16xf32>
    %c4_i32_262 = arith.constant 4 : i32
    %c0_i32_263 = arith.constant 0 : i32
    %c0_i32_264 = arith.constant 0 : i32
    %508 = tpu.memref_slice %arg6[%c4_i32_262, %c0_i32_263, %c0_i32_264] : memref<8x18x18xf32, #tpu.memory_space<vmem>> -> memref<1x18x18xf32, #tpu.memory_space<vmem>>
    %509 = tpu.memref_squeeze %508 : memref<1x18x18xf32, #tpu.memory_space<vmem>> -> memref<18x18xf32, #tpu.memory_space<vmem>>
    %c2_265 = arith.constant 2 : index
    %c0_266 = arith.constant 0 : index
    %510 = vector.load %509[%c2_265, %c0_266] : memref<18x18xf32, #tpu.memory_space<vmem>>, vector<16x18xf32>
    %c4_i32_267 = arith.constant 4 : i32
    %511 = arith.addi %0, %c4_i32_267 : i32
    %c9_i32_268 = arith.constant 9 : i32
    %512 = arith.muli %511, %c9_i32_268 : i32
    %c6_i32_269 = arith.constant 6 : i32
    %513 = arith.addi %512, %c6_i32_269 : i32
    %c0_i32_270 = arith.constant 0 : i32
    %514 = arith.addi %513, %c0_i32_270 : i32
    %515 = arith.index_cast %514 : i32 to index
    %516 = memref.load %arg3[%515] : memref<72xf32, #tpu.memory_space<smem>>
    %517 = vector.extract_strided_slice %510 {offsets = [0, 0], sizes = [16, 16], strides = [1, 1]} : vector<16x18xf32> to vector<16x16xf32>
    %518 = vector.broadcast %516 : f32 to vector<16x16xf32>
    %519 = arith.mulf %517, %518 : vector<16x16xf32>
    %520 = arith.addf %507, %519 : vector<16x16xf32>
    %c4_i32_271 = arith.constant 4 : i32
    %521 = arith.addi %0, %c4_i32_271 : i32
    %c9_i32_272 = arith.constant 9 : i32
    %522 = arith.muli %521, %c9_i32_272 : i32
    %c6_i32_273 = arith.constant 6 : i32
    %523 = arith.addi %522, %c6_i32_273 : i32
    %c1_i32_274 = arith.constant 1 : i32
    %524 = arith.addi %523, %c1_i32_274 : i32
    %525 = arith.index_cast %524 : i32 to index
    %526 = memref.load %arg3[%525] : memref<72xf32, #tpu.memory_space<smem>>
    %527 = vector.extract_strided_slice %510 {offsets = [0, 1], sizes = [16, 16], strides = [1, 1]} : vector<16x18xf32> to vector<16x16xf32>
    %528 = vector.broadcast %526 : f32 to vector<16x16xf32>
    %529 = arith.mulf %527, %528 : vector<16x16xf32>
    %530 = arith.addf %520, %529 : vector<16x16xf32>
    %c4_i32_275 = arith.constant 4 : i32
    %531 = arith.addi %0, %c4_i32_275 : i32
    %c9_i32_276 = arith.constant 9 : i32
    %532 = arith.muli %531, %c9_i32_276 : i32
    %c6_i32_277 = arith.constant 6 : i32
    %533 = arith.addi %532, %c6_i32_277 : i32
    %c2_i32_278 = arith.constant 2 : i32
    %534 = arith.addi %533, %c2_i32_278 : i32
    %535 = arith.index_cast %534 : i32 to index
    %536 = memref.load %arg3[%535] : memref<72xf32, #tpu.memory_space<smem>>
    %537 = vector.extract_strided_slice %510 {offsets = [0, 2], sizes = [16, 16], strides = [1, 1]} : vector<16x18xf32> to vector<16x16xf32>
    %538 = vector.broadcast %536 : f32 to vector<16x16xf32>
    %539 = arith.mulf %537, %538 : vector<16x16xf32>
    %540 = arith.addf %530, %539 : vector<16x16xf32>
    %cst_279 = arith.constant 0.000000e+00 : f32
    %541 = vector.broadcast %cst_279 : f32 to vector<16x16xf32>
    %542 = arith.maximumf %540, %541 : vector<16x16xf32>
    %c0_280 = arith.constant 0 : index
    %c4 = arith.constant 4 : index
    %c0_281 = arith.constant 0 : index
    %c0_282 = arith.constant 0 : index
    %543 = vector.load %arg5[%c0_280, %c4, %c0_281, %c0_282] : memref<1x8x16x16xf32, #tpu.memory_space<vmem>>, vector<1x1x16x16xf32>
    %544 = vector.shape_cast %543 : vector<1x1x16x16xf32> to vector<16x16xf32>
    %545 = vector.shape_cast %542 : vector<16x16xf32> to vector<1x1x16x16xf32>
    tpu.vector_store %arg5[%c0_280, %c4, %c0_281, %c0_282], %545 {strides = array<i32>} : memref<1x8x16x16xf32, #tpu.memory_space<vmem>>, vector<1x1x16x16xf32>,
    %c5_i32 = arith.constant 5 : i32
    %546 = arith.addi %0, %c5_i32 : i32
    %547 = arith.index_cast %546 : i32 to index
    %548 = memref.load %arg4[%547] : memref<8xf32, #tpu.memory_space<smem>>
    %549 = vector.broadcast %548 : f32 to vector<16x16xf32>
    %c5_i32_283 = arith.constant 5 : i32
    %c0_i32_284 = arith.constant 0 : i32
    %c0_i32_285 = arith.constant 0 : i32
    %550 = tpu.memref_slice %arg6[%c5_i32_283, %c0_i32_284, %c0_i32_285] : memref<8x18x18xf32, #tpu.memory_space<vmem>> -> memref<1x18x18xf32, #tpu.memory_space<vmem>>
    %551 = tpu.memref_squeeze %550 : memref<1x18x18xf32, #tpu.memory_space<vmem>> -> memref<18x18xf32, #tpu.memory_space<vmem>>
    %c0_286 = arith.constant 0 : index
    %c0_287 = arith.constant 0 : index
    %552 = vector.load %551[%c0_286, %c0_287] : memref<18x18xf32, #tpu.memory_space<vmem>>, vector<16x18xf32>
    %c5_i32_288 = arith.constant 5 : i32
    %553 = arith.addi %0, %c5_i32_288 : i32
    %c9_i32_289 = arith.constant 9 : i32
    %554 = arith.muli %553, %c9_i32_289 : i32
    %c0_i32_290 = arith.constant 0 : i32
    %555 = arith.addi %554, %c0_i32_290 : i32
    %c0_i32_291 = arith.constant 0 : i32
    %556 = arith.addi %555, %c0_i32_291 : i32
    %557 = arith.index_cast %556 : i32 to index
    %558 = memref.load %arg3[%557] : memref<72xf32, #tpu.memory_space<smem>>
    %559 = vector.extract_strided_slice %552 {offsets = [0, 0], sizes = [16, 16], strides = [1, 1]} : vector<16x18xf32> to vector<16x16xf32>
    %560 = vector.broadcast %558 : f32 to vector<16x16xf32>
    %561 = arith.mulf %559, %560 : vector<16x16xf32>
    %562 = arith.addf %549, %561 : vector<16x16xf32>
    %c5_i32_292 = arith.constant 5 : i32
    %563 = arith.addi %0, %c5_i32_292 : i32
    %c9_i32_293 = arith.constant 9 : i32
    %564 = arith.muli %563, %c9_i32_293 : i32
    %c0_i32_294 = arith.constant 0 : i32
    %565 = arith.addi %564, %c0_i32_294 : i32
    %c1_i32_295 = arith.constant 1 : i32
    %566 = arith.addi %565, %c1_i32_295 : i32
    %567 = arith.index_cast %566 : i32 to index
    %568 = memref.load %arg3[%567] : memref<72xf32, #tpu.memory_space<smem>>
    %569 = vector.extract_strided_slice %552 {offsets = [0, 1], sizes = [16, 16], strides = [1, 1]} : vector<16x18xf32> to vector<16x16xf32>
    %570 = vector.broadcast %568 : f32 to vector<16x16xf32>
    %571 = arith.mulf %569, %570 : vector<16x16xf32>
    %572 = arith.addf %562, %571 : vector<16x16xf32>
    %c5_i32_296 = arith.constant 5 : i32
    %573 = arith.addi %0, %c5_i32_296 : i32
    %c9_i32_297 = arith.constant 9 : i32
    %574 = arith.muli %573, %c9_i32_297 : i32
    %c0_i32_298 = arith.constant 0 : i32
    %575 = arith.addi %574, %c0_i32_298 : i32
    %c2_i32_299 = arith.constant 2 : i32
    %576 = arith.addi %575, %c2_i32_299 : i32
    %577 = arith.index_cast %576 : i32 to index
    %578 = memref.load %arg3[%577] : memref<72xf32, #tpu.memory_space<smem>>
    %579 = vector.extract_strided_slice %552 {offsets = [0, 2], sizes = [16, 16], strides = [1, 1]} : vector<16x18xf32> to vector<16x16xf32>
    %580 = vector.broadcast %578 : f32 to vector<16x16xf32>
    %581 = arith.mulf %579, %580 : vector<16x16xf32>
    %582 = arith.addf %572, %581 : vector<16x16xf32>
    %c5_i32_300 = arith.constant 5 : i32
    %c0_i32_301 = arith.constant 0 : i32
    %c0_i32_302 = arith.constant 0 : i32
    %583 = tpu.memref_slice %arg6[%c5_i32_300, %c0_i32_301, %c0_i32_302] : memref<8x18x18xf32, #tpu.memory_space<vmem>> -> memref<1x18x18xf32, #tpu.memory_space<vmem>>
    %584 = tpu.memref_squeeze %583 : memref<1x18x18xf32, #tpu.memory_space<vmem>> -> memref<18x18xf32, #tpu.memory_space<vmem>>
    %c1_303 = arith.constant 1 : index
    %c0_304 = arith.constant 0 : index
    %585 = vector.load %584[%c1_303, %c0_304] : memref<18x18xf32, #tpu.memory_space<vmem>>, vector<16x18xf32>
    %c5_i32_305 = arith.constant 5 : i32
    %586 = arith.addi %0, %c5_i32_305 : i32
    %c9_i32_306 = arith.constant 9 : i32
    %587 = arith.muli %586, %c9_i32_306 : i32
    %c3_i32_307 = arith.constant 3 : i32
    %588 = arith.addi %587, %c3_i32_307 : i32
    %c0_i32_308 = arith.constant 0 : i32
    %589 = arith.addi %588, %c0_i32_308 : i32
    %590 = arith.index_cast %589 : i32 to index
    %591 = memref.load %arg3[%590] : memref<72xf32, #tpu.memory_space<smem>>
    %592 = vector.extract_strided_slice %585 {offsets = [0, 0], sizes = [16, 16], strides = [1, 1]} : vector<16x18xf32> to vector<16x16xf32>
    %593 = vector.broadcast %591 : f32 to vector<16x16xf32>
    %594 = arith.mulf %592, %593 : vector<16x16xf32>
    %595 = arith.addf %582, %594 : vector<16x16xf32>
    %c5_i32_309 = arith.constant 5 : i32
    %596 = arith.addi %0, %c5_i32_309 : i32
    %c9_i32_310 = arith.constant 9 : i32
    %597 = arith.muli %596, %c9_i32_310 : i32
    %c3_i32_311 = arith.constant 3 : i32
    %598 = arith.addi %597, %c3_i32_311 : i32
    %c1_i32_312 = arith.constant 1 : i32
    %599 = arith.addi %598, %c1_i32_312 : i32
    %600 = arith.index_cast %599 : i32 to index
    %601 = memref.load %arg3[%600] : memref<72xf32, #tpu.memory_space<smem>>
    %602 = vector.extract_strided_slice %585 {offsets = [0, 1], sizes = [16, 16], strides = [1, 1]} : vector<16x18xf32> to vector<16x16xf32>
    %603 = vector.broadcast %601 : f32 to vector<16x16xf32>
    %604 = arith.mulf %602, %603 : vector<16x16xf32>
    %605 = arith.addf %595, %604 : vector<16x16xf32>
    %c5_i32_313 = arith.constant 5 : i32
    %606 = arith.addi %0, %c5_i32_313 : i32
    %c9_i32_314 = arith.constant 9 : i32
    %607 = arith.muli %606, %c9_i32_314 : i32
    %c3_i32_315 = arith.constant 3 : i32
    %608 = arith.addi %607, %c3_i32_315 : i32
    %c2_i32_316 = arith.constant 2 : i32
    %609 = arith.addi %608, %c2_i32_316 : i32
    %610 = arith.index_cast %609 : i32 to index
    %611 = memref.load %arg3[%610] : memref<72xf32, #tpu.memory_space<smem>>
    %612 = vector.extract_strided_slice %585 {offsets = [0, 2], sizes = [16, 16], strides = [1, 1]} : vector<16x18xf32> to vector<16x16xf32>
    %613 = vector.broadcast %611 : f32 to vector<16x16xf32>
    %614 = arith.mulf %612, %613 : vector<16x16xf32>
    %615 = arith.addf %605, %614 : vector<16x16xf32>
    %c5_i32_317 = arith.constant 5 : i32
    %c0_i32_318 = arith.constant 0 : i32
    %c0_i32_319 = arith.constant 0 : i32
    %616 = tpu.memref_slice %arg6[%c5_i32_317, %c0_i32_318, %c0_i32_319] : memref<8x18x18xf32, #tpu.memory_space<vmem>> -> memref<1x18x18xf32, #tpu.memory_space<vmem>>
    %617 = tpu.memref_squeeze %616 : memref<1x18x18xf32, #tpu.memory_space<vmem>> -> memref<18x18xf32, #tpu.memory_space<vmem>>
    %c2_320 = arith.constant 2 : index
    %c0_321 = arith.constant 0 : index
    %618 = vector.load %617[%c2_320, %c0_321] : memref<18x18xf32, #tpu.memory_space<vmem>>, vector<16x18xf32>
    %c5_i32_322 = arith.constant 5 : i32
    %619 = arith.addi %0, %c5_i32_322 : i32
    %c9_i32_323 = arith.constant 9 : i32
    %620 = arith.muli %619, %c9_i32_323 : i32
    %c6_i32_324 = arith.constant 6 : i32
    %621 = arith.addi %620, %c6_i32_324 : i32
    %c0_i32_325 = arith.constant 0 : i32
    %622 = arith.addi %621, %c0_i32_325 : i32
    %623 = arith.index_cast %622 : i32 to index
    %624 = memref.load %arg3[%623] : memref<72xf32, #tpu.memory_space<smem>>
    %625 = vector.extract_strided_slice %618 {offsets = [0, 0], sizes = [16, 16], strides = [1, 1]} : vector<16x18xf32> to vector<16x16xf32>
    %626 = vector.broadcast %624 : f32 to vector<16x16xf32>
    %627 = arith.mulf %625, %626 : vector<16x16xf32>
    %628 = arith.addf %615, %627 : vector<16x16xf32>
    %c5_i32_326 = arith.constant 5 : i32
    %629 = arith.addi %0, %c5_i32_326 : i32
    %c9_i32_327 = arith.constant 9 : i32
    %630 = arith.muli %629, %c9_i32_327 : i32
    %c6_i32_328 = arith.constant 6 : i32
    %631 = arith.addi %630, %c6_i32_328 : i32
    %c1_i32_329 = arith.constant 1 : i32
    %632 = arith.addi %631, %c1_i32_329 : i32
    %633 = arith.index_cast %632 : i32 to index
    %634 = memref.load %arg3[%633] : memref<72xf32, #tpu.memory_space<smem>>
    %635 = vector.extract_strided_slice %618 {offsets = [0, 1], sizes = [16, 16], strides = [1, 1]} : vector<16x18xf32> to vector<16x16xf32>
    %636 = vector.broadcast %634 : f32 to vector<16x16xf32>
    %637 = arith.mulf %635, %636 : vector<16x16xf32>
    %638 = arith.addf %628, %637 : vector<16x16xf32>
    %c5_i32_330 = arith.constant 5 : i32
    %639 = arith.addi %0, %c5_i32_330 : i32
    %c9_i32_331 = arith.constant 9 : i32
    %640 = arith.muli %639, %c9_i32_331 : i32
    %c6_i32_332 = arith.constant 6 : i32
    %641 = arith.addi %640, %c6_i32_332 : i32
    %c2_i32_333 = arith.constant 2 : i32
    %642 = arith.addi %641, %c2_i32_333 : i32
    %643 = arith.index_cast %642 : i32 to index
    %644 = memref.load %arg3[%643] : memref<72xf32, #tpu.memory_space<smem>>
    %645 = vector.extract_strided_slice %618 {offsets = [0, 2], sizes = [16, 16], strides = [1, 1]} : vector<16x18xf32> to vector<16x16xf32>
    %646 = vector.broadcast %644 : f32 to vector<16x16xf32>
    %647 = arith.mulf %645, %646 : vector<16x16xf32>
    %648 = arith.addf %638, %647 : vector<16x16xf32>
    %cst_334 = arith.constant 0.000000e+00 : f32
    %649 = vector.broadcast %cst_334 : f32 to vector<16x16xf32>
    %650 = arith.maximumf %648, %649 : vector<16x16xf32>
    %c0_335 = arith.constant 0 : index
    %c5 = arith.constant 5 : index
    %c0_336 = arith.constant 0 : index
    %c0_337 = arith.constant 0 : index
    %651 = vector.load %arg5[%c0_335, %c5, %c0_336, %c0_337] : memref<1x8x16x16xf32, #tpu.memory_space<vmem>>, vector<1x1x16x16xf32>
    %652 = vector.shape_cast %651 : vector<1x1x16x16xf32> to vector<16x16xf32>
    %653 = vector.shape_cast %650 : vector<16x16xf32> to vector<1x1x16x16xf32>
    tpu.vector_store %arg5[%c0_335, %c5, %c0_336, %c0_337], %653 {strides = array<i32>} : memref<1x8x16x16xf32, #tpu.memory_space<vmem>>, vector<1x1x16x16xf32>,
    %c6_i32_338 = arith.constant 6 : i32
    %654 = arith.addi %0, %c6_i32_338 : i32
    %655 = arith.index_cast %654 : i32 to index
    %656 = memref.load %arg4[%655] : memref<8xf32, #tpu.memory_space<smem>>
    %657 = vector.broadcast %656 : f32 to vector<16x16xf32>
    %c6_i32_339 = arith.constant 6 : i32
    %c0_i32_340 = arith.constant 0 : i32
    %c0_i32_341 = arith.constant 0 : i32
    %658 = tpu.memref_slice %arg6[%c6_i32_339, %c0_i32_340, %c0_i32_341] : memref<8x18x18xf32, #tpu.memory_space<vmem>> -> memref<1x18x18xf32, #tpu.memory_space<vmem>>
    %659 = tpu.memref_squeeze %658 : memref<1x18x18xf32, #tpu.memory_space<vmem>> -> memref<18x18xf32, #tpu.memory_space<vmem>>
    %c0_342 = arith.constant 0 : index
    %c0_343 = arith.constant 0 : index
    %660 = vector.load %659[%c0_342, %c0_343] : memref<18x18xf32, #tpu.memory_space<vmem>>, vector<16x18xf32>
    %c6_i32_344 = arith.constant 6 : i32
    %661 = arith.addi %0, %c6_i32_344 : i32
    %c9_i32_345 = arith.constant 9 : i32
    %662 = arith.muli %661, %c9_i32_345 : i32
    %c0_i32_346 = arith.constant 0 : i32
    %663 = arith.addi %662, %c0_i32_346 : i32
    %c0_i32_347 = arith.constant 0 : i32
    %664 = arith.addi %663, %c0_i32_347 : i32
    %665 = arith.index_cast %664 : i32 to index
    %666 = memref.load %arg3[%665] : memref<72xf32, #tpu.memory_space<smem>>
    %667 = vector.extract_strided_slice %660 {offsets = [0, 0], sizes = [16, 16], strides = [1, 1]} : vector<16x18xf32> to vector<16x16xf32>
    %668 = vector.broadcast %666 : f32 to vector<16x16xf32>
    %669 = arith.mulf %667, %668 : vector<16x16xf32>
    %670 = arith.addf %657, %669 : vector<16x16xf32>
    %c6_i32_348 = arith.constant 6 : i32
    %671 = arith.addi %0, %c6_i32_348 : i32
    %c9_i32_349 = arith.constant 9 : i32
    %672 = arith.muli %671, %c9_i32_349 : i32
    %c0_i32_350 = arith.constant 0 : i32
    %673 = arith.addi %672, %c0_i32_350 : i32
    %c1_i32_351 = arith.constant 1 : i32
    %674 = arith.addi %673, %c1_i32_351 : i32
    %675 = arith.index_cast %674 : i32 to index
    %676 = memref.load %arg3[%675] : memref<72xf32, #tpu.memory_space<smem>>
    %677 = vector.extract_strided_slice %660 {offsets = [0, 1], sizes = [16, 16], strides = [1, 1]} : vector<16x18xf32> to vector<16x16xf32>
    %678 = vector.broadcast %676 : f32 to vector<16x16xf32>
    %679 = arith.mulf %677, %678 : vector<16x16xf32>
    %680 = arith.addf %670, %679 : vector<16x16xf32>
    %c6_i32_352 = arith.constant 6 : i32
    %681 = arith.addi %0, %c6_i32_352 : i32
    %c9_i32_353 = arith.constant 9 : i32
    %682 = arith.muli %681, %c9_i32_353 : i32
    %c0_i32_354 = arith.constant 0 : i32
    %683 = arith.addi %682, %c0_i32_354 : i32
    %c2_i32_355 = arith.constant 2 : i32
    %684 = arith.addi %683, %c2_i32_355 : i32
    %685 = arith.index_cast %684 : i32 to index
    %686 = memref.load %arg3[%685] : memref<72xf32, #tpu.memory_space<smem>>
    %687 = vector.extract_strided_slice %660 {offsets = [0, 2], sizes = [16, 16], strides = [1, 1]} : vector<16x18xf32> to vector<16x16xf32>
    %688 = vector.broadcast %686 : f32 to vector<16x16xf32>
    %689 = arith.mulf %687, %688 : vector<16x16xf32>
    %690 = arith.addf %680, %689 : vector<16x16xf32>
    %c6_i32_356 = arith.constant 6 : i32
    %c0_i32_357 = arith.constant 0 : i32
    %c0_i32_358 = arith.constant 0 : i32
    %691 = tpu.memref_slice %arg6[%c6_i32_356, %c0_i32_357, %c0_i32_358] : memref<8x18x18xf32, #tpu.memory_space<vmem>> -> memref<1x18x18xf32, #tpu.memory_space<vmem>>
    %692 = tpu.memref_squeeze %691 : memref<1x18x18xf32, #tpu.memory_space<vmem>> -> memref<18x18xf32, #tpu.memory_space<vmem>>
    %c1_359 = arith.constant 1 : index
    %c0_360 = arith.constant 0 : index
    %693 = vector.load %692[%c1_359, %c0_360] : memref<18x18xf32, #tpu.memory_space<vmem>>, vector<16x18xf32>
    %c6_i32_361 = arith.constant 6 : i32
    %694 = arith.addi %0, %c6_i32_361 : i32
    %c9_i32_362 = arith.constant 9 : i32
    %695 = arith.muli %694, %c9_i32_362 : i32
    %c3_i32_363 = arith.constant 3 : i32
    %696 = arith.addi %695, %c3_i32_363 : i32
    %c0_i32_364 = arith.constant 0 : i32
    %697 = arith.addi %696, %c0_i32_364 : i32
    %698 = arith.index_cast %697 : i32 to index
    %699 = memref.load %arg3[%698] : memref<72xf32, #tpu.memory_space<smem>>
    %700 = vector.extract_strided_slice %693 {offsets = [0, 0], sizes = [16, 16], strides = [1, 1]} : vector<16x18xf32> to vector<16x16xf32>
    %701 = vector.broadcast %699 : f32 to vector<16x16xf32>
    %702 = arith.mulf %700, %701 : vector<16x16xf32>
    %703 = arith.addf %690, %702 : vector<16x16xf32>
    %c6_i32_365 = arith.constant 6 : i32
    %704 = arith.addi %0, %c6_i32_365 : i32
    %c9_i32_366 = arith.constant 9 : i32
    %705 = arith.muli %704, %c9_i32_366 : i32
    %c3_i32_367 = arith.constant 3 : i32
    %706 = arith.addi %705, %c3_i32_367 : i32
    %c1_i32_368 = arith.constant 1 : i32
    %707 = arith.addi %706, %c1_i32_368 : i32
    %708 = arith.index_cast %707 : i32 to index
    %709 = memref.load %arg3[%708] : memref<72xf32, #tpu.memory_space<smem>>
    %710 = vector.extract_strided_slice %693 {offsets = [0, 1], sizes = [16, 16], strides = [1, 1]} : vector<16x18xf32> to vector<16x16xf32>
    %711 = vector.broadcast %709 : f32 to vector<16x16xf32>
    %712 = arith.mulf %710, %711 : vector<16x16xf32>
    %713 = arith.addf %703, %712 : vector<16x16xf32>
    %c6_i32_369 = arith.constant 6 : i32
    %714 = arith.addi %0, %c6_i32_369 : i32
    %c9_i32_370 = arith.constant 9 : i32
    %715 = arith.muli %714, %c9_i32_370 : i32
    %c3_i32_371 = arith.constant 3 : i32
    %716 = arith.addi %715, %c3_i32_371 : i32
    %c2_i32_372 = arith.constant 2 : i32
    %717 = arith.addi %716, %c2_i32_372 : i32
    %718 = arith.index_cast %717 : i32 to index
    %719 = memref.load %arg3[%718] : memref<72xf32, #tpu.memory_space<smem>>
    %720 = vector.extract_strided_slice %693 {offsets = [0, 2], sizes = [16, 16], strides = [1, 1]} : vector<16x18xf32> to vector<16x16xf32>
    %721 = vector.broadcast %719 : f32 to vector<16x16xf32>
    %722 = arith.mulf %720, %721 : vector<16x16xf32>
    %723 = arith.addf %713, %722 : vector<16x16xf32>
    %c6_i32_373 = arith.constant 6 : i32
    %c0_i32_374 = arith.constant 0 : i32
    %c0_i32_375 = arith.constant 0 : i32
    %724 = tpu.memref_slice %arg6[%c6_i32_373, %c0_i32_374, %c0_i32_375] : memref<8x18x18xf32, #tpu.memory_space<vmem>> -> memref<1x18x18xf32, #tpu.memory_space<vmem>>
    %725 = tpu.memref_squeeze %724 : memref<1x18x18xf32, #tpu.memory_space<vmem>> -> memref<18x18xf32, #tpu.memory_space<vmem>>
    %c2_376 = arith.constant 2 : index
    %c0_377 = arith.constant 0 : index
    %726 = vector.load %725[%c2_376, %c0_377] : memref<18x18xf32, #tpu.memory_space<vmem>>, vector<16x18xf32>
    %c6_i32_378 = arith.constant 6 : i32
    %727 = arith.addi %0, %c6_i32_378 : i32
    %c9_i32_379 = arith.constant 9 : i32
    %728 = arith.muli %727, %c9_i32_379 : i32
    %c6_i32_380 = arith.constant 6 : i32
    %729 = arith.addi %728, %c6_i32_380 : i32
    %c0_i32_381 = arith.constant 0 : i32
    %730 = arith.addi %729, %c0_i32_381 : i32
    %731 = arith.index_cast %730 : i32 to index
    %732 = memref.load %arg3[%731] : memref<72xf32, #tpu.memory_space<smem>>
    %733 = vector.extract_strided_slice %726 {offsets = [0, 0], sizes = [16, 16], strides = [1, 1]} : vector<16x18xf32> to vector<16x16xf32>
    %734 = vector.broadcast %732 : f32 to vector<16x16xf32>
    %735 = arith.mulf %733, %734 : vector<16x16xf32>
    %736 = arith.addf %723, %735 : vector<16x16xf32>
    %c6_i32_382 = arith.constant 6 : i32
    %737 = arith.addi %0, %c6_i32_382 : i32
    %c9_i32_383 = arith.constant 9 : i32
    %738 = arith.muli %737, %c9_i32_383 : i32
    %c6_i32_384 = arith.constant 6 : i32
    %739 = arith.addi %738, %c6_i32_384 : i32
    %c1_i32_385 = arith.constant 1 : i32
    %740 = arith.addi %739, %c1_i32_385 : i32
    %741 = arith.index_cast %740 : i32 to index
    %742 = memref.load %arg3[%741] : memref<72xf32, #tpu.memory_space<smem>>
    %743 = vector.extract_strided_slice %726 {offsets = [0, 1], sizes = [16, 16], strides = [1, 1]} : vector<16x18xf32> to vector<16x16xf32>
    %744 = vector.broadcast %742 : f32 to vector<16x16xf32>
    %745 = arith.mulf %743, %744 : vector<16x16xf32>
    %746 = arith.addf %736, %745 : vector<16x16xf32>
    %c6_i32_386 = arith.constant 6 : i32
    %747 = arith.addi %0, %c6_i32_386 : i32
    %c9_i32_387 = arith.constant 9 : i32
    %748 = arith.muli %747, %c9_i32_387 : i32
    %c6_i32_388 = arith.constant 6 : i32
    %749 = arith.addi %748, %c6_i32_388 : i32
    %c2_i32_389 = arith.constant 2 : i32
    %750 = arith.addi %749, %c2_i32_389 : i32
    %751 = arith.index_cast %750 : i32 to index
    %752 = memref.load %arg3[%751] : memref<72xf32, #tpu.memory_space<smem>>
    %753 = vector.extract_strided_slice %726 {offsets = [0, 2], sizes = [16, 16], strides = [1, 1]} : vector<16x18xf32> to vector<16x16xf32>
    %754 = vector.broadcast %752 : f32 to vector<16x16xf32>
    %755 = arith.mulf %753, %754 : vector<16x16xf32>
    %756 = arith.addf %746, %755 : vector<16x16xf32>
    %cst_390 = arith.constant 0.000000e+00 : f32
    %757 = vector.broadcast %cst_390 : f32 to vector<16x16xf32>
    %758 = arith.maximumf %756, %757 : vector<16x16xf32>
    %c0_391 = arith.constant 0 : index
    %c6 = arith.constant 6 : index
    %c0_392 = arith.constant 0 : index
    %c0_393 = arith.constant 0 : index
    %759 = vector.load %arg5[%c0_391, %c6, %c0_392, %c0_393] : memref<1x8x16x16xf32, #tpu.memory_space<vmem>>, vector<1x1x16x16xf32>
    %760 = vector.shape_cast %759 : vector<1x1x16x16xf32> to vector<16x16xf32>
    %761 = vector.shape_cast %758 : vector<16x16xf32> to vector<1x1x16x16xf32>
    tpu.vector_store %arg5[%c0_391, %c6, %c0_392, %c0_393], %761 {strides = array<i32>} : memref<1x8x16x16xf32, #tpu.memory_space<vmem>>, vector<1x1x16x16xf32>,
    %c7_i32 = arith.constant 7 : i32
    %762 = arith.addi %0, %c7_i32 : i32
    %763 = arith.index_cast %762 : i32 to index
    %764 = memref.load %arg4[%763] : memref<8xf32, #tpu.memory_space<smem>>
    %765 = vector.broadcast %764 : f32 to vector<16x16xf32>
    %c7_i32_394 = arith.constant 7 : i32
    %c0_i32_395 = arith.constant 0 : i32
    %c0_i32_396 = arith.constant 0 : i32
    %766 = tpu.memref_slice %arg6[%c7_i32_394, %c0_i32_395, %c0_i32_396] : memref<8x18x18xf32, #tpu.memory_space<vmem>> -> memref<1x18x18xf32, #tpu.memory_space<vmem>>
    %767 = tpu.memref_squeeze %766 : memref<1x18x18xf32, #tpu.memory_space<vmem>> -> memref<18x18xf32, #tpu.memory_space<vmem>>
    %c0_397 = arith.constant 0 : index
    %c0_398 = arith.constant 0 : index
    %768 = vector.load %767[%c0_397, %c0_398] : memref<18x18xf32, #tpu.memory_space<vmem>>, vector<16x18xf32>
    %c7_i32_399 = arith.constant 7 : i32
    %769 = arith.addi %0, %c7_i32_399 : i32
    %c9_i32_400 = arith.constant 9 : i32
    %770 = arith.muli %769, %c9_i32_400 : i32
    %c0_i32_401 = arith.constant 0 : i32
    %771 = arith.addi %770, %c0_i32_401 : i32
    %c0_i32_402 = arith.constant 0 : i32
    %772 = arith.addi %771, %c0_i32_402 : i32
    %773 = arith.index_cast %772 : i32 to index
    %774 = memref.load %arg3[%773] : memref<72xf32, #tpu.memory_space<smem>>
    %775 = vector.extract_strided_slice %768 {offsets = [0, 0], sizes = [16, 16], strides = [1, 1]} : vector<16x18xf32> to vector<16x16xf32>
    %776 = vector.broadcast %774 : f32 to vector<16x16xf32>
    %777 = arith.mulf %775, %776 : vector<16x16xf32>
    %778 = arith.addf %765, %777 : vector<16x16xf32>
    %c7_i32_403 = arith.constant 7 : i32
    %779 = arith.addi %0, %c7_i32_403 : i32
    %c9_i32_404 = arith.constant 9 : i32
    %780 = arith.muli %779, %c9_i32_404 : i32
    %c0_i32_405 = arith.constant 0 : i32
    %781 = arith.addi %780, %c0_i32_405 : i32
    %c1_i32_406 = arith.constant 1 : i32
    %782 = arith.addi %781, %c1_i32_406 : i32
    %783 = arith.index_cast %782 : i32 to index
    %784 = memref.load %arg3[%783] : memref<72xf32, #tpu.memory_space<smem>>
    %785 = vector.extract_strided_slice %768 {offsets = [0, 1], sizes = [16, 16], strides = [1, 1]} : vector<16x18xf32> to vector<16x16xf32>
    %786 = vector.broadcast %784 : f32 to vector<16x16xf32>
    %787 = arith.mulf %785, %786 : vector<16x16xf32>
    %788 = arith.addf %778, %787 : vector<16x16xf32>
    %c7_i32_407 = arith.constant 7 : i32
    %789 = arith.addi %0, %c7_i32_407 : i32
    %c9_i32_408 = arith.constant 9 : i32
    %790 = arith.muli %789, %c9_i32_408 : i32
    %c0_i32_409 = arith.constant 0 : i32
    %791 = arith.addi %790, %c0_i32_409 : i32
    %c2_i32_410 = arith.constant 2 : i32
    %792 = arith.addi %791, %c2_i32_410 : i32
    %793 = arith.index_cast %792 : i32 to index
    %794 = memref.load %arg3[%793] : memref<72xf32, #tpu.memory_space<smem>>
    %795 = vector.extract_strided_slice %768 {offsets = [0, 2], sizes = [16, 16], strides = [1, 1]} : vector<16x18xf32> to vector<16x16xf32>
    %796 = vector.broadcast %794 : f32 to vector<16x16xf32>
    %797 = arith.mulf %795, %796 : vector<16x16xf32>
    %798 = arith.addf %788, %797 : vector<16x16xf32>
    %c7_i32_411 = arith.constant 7 : i32
    %c0_i32_412 = arith.constant 0 : i32
    %c0_i32_413 = arith.constant 0 : i32
    %799 = tpu.memref_slice %arg6[%c7_i32_411, %c0_i32_412, %c0_i32_413] : memref<8x18x18xf32, #tpu.memory_space<vmem>> -> memref<1x18x18xf32, #tpu.memory_space<vmem>>
    %800 = tpu.memref_squeeze %799 : memref<1x18x18xf32, #tpu.memory_space<vmem>> -> memref<18x18xf32, #tpu.memory_space<vmem>>
    %c1_414 = arith.constant 1 : index
    %c0_415 = arith.constant 0 : index
    %801 = vector.load %800[%c1_414, %c0_415] : memref<18x18xf32, #tpu.memory_space<vmem>>, vector<16x18xf32>
    %c7_i32_416 = arith.constant 7 : i32
    %802 = arith.addi %0, %c7_i32_416 : i32
    %c9_i32_417 = arith.constant 9 : i32
    %803 = arith.muli %802, %c9_i32_417 : i32
    %c3_i32_418 = arith.constant 3 : i32
    %804 = arith.addi %803, %c3_i32_418 : i32
    %c0_i32_419 = arith.constant 0 : i32
    %805 = arith.addi %804, %c0_i32_419 : i32
    %806 = arith.index_cast %805 : i32 to index
    %807 = memref.load %arg3[%806] : memref<72xf32, #tpu.memory_space<smem>>
    %808 = vector.extract_strided_slice %801 {offsets = [0, 0], sizes = [16, 16], strides = [1, 1]} : vector<16x18xf32> to vector<16x16xf32>
    %809 = vector.broadcast %807 : f32 to vector<16x16xf32>
    %810 = arith.mulf %808, %809 : vector<16x16xf32>
    %811 = arith.addf %798, %810 : vector<16x16xf32>
    %c7_i32_420 = arith.constant 7 : i32
    %812 = arith.addi %0, %c7_i32_420 : i32
    %c9_i32_421 = arith.constant 9 : i32
    %813 = arith.muli %812, %c9_i32_421 : i32
    %c3_i32_422 = arith.constant 3 : i32
    %814 = arith.addi %813, %c3_i32_422 : i32
    %c1_i32_423 = arith.constant 1 : i32
    %815 = arith.addi %814, %c1_i32_423 : i32
    %816 = arith.index_cast %815 : i32 to index
    %817 = memref.load %arg3[%816] : memref<72xf32, #tpu.memory_space<smem>>
    %818 = vector.extract_strided_slice %801 {offsets = [0, 1], sizes = [16, 16], strides = [1, 1]} : vector<16x18xf32> to vector<16x16xf32>
    %819 = vector.broadcast %817 : f32 to vector<16x16xf32>
    %820 = arith.mulf %818, %819 : vector<16x16xf32>
    %821 = arith.addf %811, %820 : vector<16x16xf32>
    %c7_i32_424 = arith.constant 7 : i32
    %822 = arith.addi %0, %c7_i32_424 : i32
    %c9_i32_425 = arith.constant 9 : i32
    %823 = arith.muli %822, %c9_i32_425 : i32
    %c3_i32_426 = arith.constant 3 : i32
    %824 = arith.addi %823, %c3_i32_426 : i32
    %c2_i32_427 = arith.constant 2 : i32
    %825 = arith.addi %824, %c2_i32_427 : i32
    %826 = arith.index_cast %825 : i32 to index
    %827 = memref.load %arg3[%826] : memref<72xf32, #tpu.memory_space<smem>>
    %828 = vector.extract_strided_slice %801 {offsets = [0, 2], sizes = [16, 16], strides = [1, 1]} : vector<16x18xf32> to vector<16x16xf32>
    %829 = vector.broadcast %827 : f32 to vector<16x16xf32>
    %830 = arith.mulf %828, %829 : vector<16x16xf32>
    %831 = arith.addf %821, %830 : vector<16x16xf32>
    %c7_i32_428 = arith.constant 7 : i32
    %c0_i32_429 = arith.constant 0 : i32
    %c0_i32_430 = arith.constant 0 : i32
    %832 = tpu.memref_slice %arg6[%c7_i32_428, %c0_i32_429, %c0_i32_430] : memref<8x18x18xf32, #tpu.memory_space<vmem>> -> memref<1x18x18xf32, #tpu.memory_space<vmem>>
    %833 = tpu.memref_squeeze %832 : memref<1x18x18xf32, #tpu.memory_space<vmem>> -> memref<18x18xf32, #tpu.memory_space<vmem>>
    %c2_431 = arith.constant 2 : index
    %c0_432 = arith.constant 0 : index
    %834 = vector.load %833[%c2_431, %c0_432] : memref<18x18xf32, #tpu.memory_space<vmem>>, vector<16x18xf32>
    %c7_i32_433 = arith.constant 7 : i32
    %835 = arith.addi %0, %c7_i32_433 : i32
    %c9_i32_434 = arith.constant 9 : i32
    %836 = arith.muli %835, %c9_i32_434 : i32
    %c6_i32_435 = arith.constant 6 : i32
    %837 = arith.addi %836, %c6_i32_435 : i32
    %c0_i32_436 = arith.constant 0 : i32
    %838 = arith.addi %837, %c0_i32_436 : i32
    %839 = arith.index_cast %838 : i32 to index
    %840 = memref.load %arg3[%839] : memref<72xf32, #tpu.memory_space<smem>>
    %841 = vector.extract_strided_slice %834 {offsets = [0, 0], sizes = [16, 16], strides = [1, 1]} : vector<16x18xf32> to vector<16x16xf32>
    %842 = vector.broadcast %840 : f32 to vector<16x16xf32>
    %843 = arith.mulf %841, %842 : vector<16x16xf32>
    %844 = arith.addf %831, %843 : vector<16x16xf32>
    %c7_i32_437 = arith.constant 7 : i32
    %845 = arith.addi %0, %c7_i32_437 : i32
    %c9_i32_438 = arith.constant 9 : i32
    %846 = arith.muli %845, %c9_i32_438 : i32
    %c6_i32_439 = arith.constant 6 : i32
    %847 = arith.addi %846, %c6_i32_439 : i32
    %c1_i32_440 = arith.constant 1 : i32
    %848 = arith.addi %847, %c1_i32_440 : i32
    %849 = arith.index_cast %848 : i32 to index
    %850 = memref.load %arg3[%849] : memref<72xf32, #tpu.memory_space<smem>>
    %851 = vector.extract_strided_slice %834 {offsets = [0, 1], sizes = [16, 16], strides = [1, 1]} : vector<16x18xf32> to vector<16x16xf32>
    %852 = vector.broadcast %850 : f32 to vector<16x16xf32>
    %853 = arith.mulf %851, %852 : vector<16x16xf32>
    %854 = arith.addf %844, %853 : vector<16x16xf32>
    %c7_i32_441 = arith.constant 7 : i32
    %855 = arith.addi %0, %c7_i32_441 : i32
    %c9_i32_442 = arith.constant 9 : i32
    %856 = arith.muli %855, %c9_i32_442 : i32
    %c6_i32_443 = arith.constant 6 : i32
    %857 = arith.addi %856, %c6_i32_443 : i32
    %c2_i32_444 = arith.constant 2 : i32
    %858 = arith.addi %857, %c2_i32_444 : i32
    %859 = arith.index_cast %858 : i32 to index
    %860 = memref.load %arg3[%859] : memref<72xf32, #tpu.memory_space<smem>>
    %861 = vector.extract_strided_slice %834 {offsets = [0, 2], sizes = [16, 16], strides = [1, 1]} : vector<16x18xf32> to vector<16x16xf32>
    %862 = vector.broadcast %860 : f32 to vector<16x16xf32>
    %863 = arith.mulf %861, %862 : vector<16x16xf32>
    %864 = arith.addf %854, %863 : vector<16x16xf32>
    %cst_445 = arith.constant 0.000000e+00 : f32
    %865 = vector.broadcast %cst_445 : f32 to vector<16x16xf32>
    %866 = arith.maximumf %864, %865 : vector<16x16xf32>
    %c0_446 = arith.constant 0 : index
    %c7 = arith.constant 7 : index
    %c0_447 = arith.constant 0 : index
    %c0_448 = arith.constant 0 : index
    %867 = vector.load %arg5[%c0_446, %c7, %c0_447, %c0_448] : memref<1x8x16x16xf32, #tpu.memory_space<vmem>>, vector<1x1x16x16xf32>
    %868 = vector.shape_cast %867 : vector<1x1x16x16xf32> to vector<16x16xf32>
    %869 = vector.shape_cast %866 : vector<16x16xf32> to vector<1x1x16x16xf32>
    tpu.vector_store %arg5[%c0_446, %c7, %c0_447, %c0_448], %869 {strides = array<i32>} : memref<1x8x16x16xf32, #tpu.memory_space<vmem>>, vector<1x1x16x16xf32>,
    return
  }
  func.func @transform_0(%arg0: i32, %arg1: i32) -> (i32, i32, i32, i32) {
    %c0_i32 = arith.constant 0 : i32
    %c0_i32_0 = arith.constant 0 : i32
    %c0_i32_1 = arith.constant 0 : i32
    return %arg0, %arg1, %c0_i32, %c0_i32_0 : i32, i32, i32, i32
  }
  func.func @transform_1(%arg0: i32, %arg1: i32) -> i32 {
    %c0_i32 = arith.constant 0 : i32
    %c0_i32_0 = arith.constant 0 : i32
    return %c0_i32 : i32
  }
  func.func @transform_2(%arg0: i32, %arg1: i32) -> i32 {
    %c0_i32 = arith.constant 0 : i32
    %c0_i32_0 = arith.constant 0 : i32
    return %c0_i32 : i32
  }
  func.func @transform_3(%arg0: i32, %arg1: i32) -> (i32, i32, i32, i32) {
    %c0_i32 = arith.constant 0 : i32
    %c0_i32_0 = arith.constant 0 : i32
    %c0_i32_1 = arith.constant 0 : i32
    return %arg0, %arg1, %c0_i32, %c0_i32_0 : i32, i32, i32, i32
  }
}

</mosaic_0001>

<llo_original>
// kernel: tpu_custom_call.1
$region0: #{tpu_custom_call.1}
  #allocation0 [shape = 'u32[]', space=smem, size = 0x4, offset = 0x4, fixed_abs, tag = 'smem constant byte address 0x4 - core index']
  #allocation1 [shape = 'u32[144,128]{1,0:T(1,128)}', space=vmem, size = 0x12000, scoped, tag = 'internal scratch']
  #allocation2 [shape = 'f32[8,18,18]{2,1,0:T(8,128)}', space=vmem, size = 0x18000, scoped, tag = 'scratch operand']
  %s0 = inlined_call_operand.hbm [shape: f32[2,8,16,16], index: 0, kind: input, shape index: {}]
  %s1 = inlined_call_operand.vmem [shape: f32[72], index: 1, kind: input, shape index: {}]
  %s2 = inlined_call_operand.vmem [shape: f32[8], index: 2, kind: input, shape index: {}]
  %s3 = inlined_call_operand.hbm [shape: f32[2,8,16,16], index: 3, kind: output, shape index: {}]
  %s4 = sld [smem:[#allocation0]]
  $region57: #{tpu_custom_call.1} parent=0
    _
  %s6 = ssub.s32 1, %s4
  %s7 = scalar_select 0, %s6, %s4
  $region1: #{tpu_custom_call.1} parent=0
    #allocation3 [shape = 'u8[131072]{0}', space=vmem, size = 0x20000, scoped, tag = 'input window, operand 0']
    #allocation4 [shape = 's32[2]{0}', space=sflag, size = 0x8, scoped, tag = 'scoped memory for tpu_custom_call.1']
    #allocation5 [shape = 's32[2]{0}', space=sflag, size = 0x8, scoped, tag = 'scoped memory for tpu_custom_call.1']
    #allocation6 [shape = 's32[2]{0}', space=sflag, size = 0x8, scoped, tag = 'scoped memory for tpu_custom_call.1']
    #allocation7 [shape = 'u8[512]{0}', space=smem, size = 0x200, scoped, tag = 'input window, operand 1, single buffered']
    #allocation8 [shape = 'u8[512]{0}', space=smem, size = 0x200, scoped, tag = 'input window, operand 2, single buffered']
    #allocation9 [shape = 's32[1]{0}', space=sflag, size = 0x4, scoped, tag = 'scoped memory for tpu_custom_call.1']
    #allocation10 [shape = 'u8[131072]{0}', space=vmem, size = 0x20000, scoped, tag = 'output window, operand 0']
    %8 = vsyncpa [#allocation4], 0
    %s9 = scalar_lea.sflag [#allocation4], 1
    %10 = vsyncpa %s9, 0
    %11 = vsyncpa [#allocation6], 0
    %12 = vsyncpa [#allocation9], 0
    %13 = vsyncpa [#allocation5], 0
    %s14 = scalar_lea.sflag [#allocation5], 1
    %15 = vsyncpa %s14, 0
    loop: start=0, step=1, limit=4
    $region2: #{tpu_custom_call.1} parent=1 // loop_pre_header
      _
    $region3: #{tpu_custom_call.1} parent=1 // loop_header
      %s17 = sphi 0, %s21
      %p18 = scmp.ge.s32.totalorder %s17, 4
      %s24 = sphi 0, %s36
      %s25 = sphi 0, %s32
      %s26 = sphi 0, %s24
      %s27 = sphi 0, %s25
      %s28 = sphi 0, %s26
      %s29 = sphi 0, %s27
      %s41 = sphi 0, %s43
      %s44 = sphi 0, %s41
      %s45 = sphi 0, %s44
      %s61 = sphi 0, %s45
      %s65 = sphi 0, %s65
      %s67 = sphi 0, %s65
      %s68 = sphi 0, %s67
      %s82 = sphi 0, %s68
      %s86 = sphi 0, %s86
      %s88 = sphi 0, %s86
      %s89 = sphi 0, %s88
      %s103 = sphi 0, %s89
      %s111 = sphi 0, %s113
      %s114 = sphi 0, %s111
      %s115 = sphi 0, %s114
      %s131 = sphi 0, %s115
    $region4: #{tpu_custom_call.1} parent=1 // loop_header_branch
      %20 = sbr.rel (%p18) target = $region8
    $region5: #{tpu_custom_call.1} parent=1 // loop_body
      %s22 = ssub.s32 %s17, 1
      %s23 = ssub.s32 %s17, 2
      %s30 = sadd.s32 1, %s25
      %p31 = scmp.ge.s32.totalorder %s30, 1
      %s32 = scalar_select %p31, 0, %s30
      %s33 = sadd.s32 1, %s24
      %s34 = scalar_select %p31, %s33, %s24
      %p35 = scmp.ge.s32.totalorder %s34, 2
      %s36 = scalar_select %p35, 0, %s34
      %s37 = ssub.s32 %s24, %s36
      %s38 = ssub.s32 %s25, %s32
      %s39 = sor.u32 %s37, %s38
      %p40 = scmp.eq.s32.totalorder %s39, 0
      %s42 = sadd.s32 %s41, 1
      %s43 = scalar_select %p40, %s41, %s42
      %p46 = pneg %p40
      %p47 = scmp.eq.s32.totalorder %s17, 1
      %p48 = por %p46, %p47
      %p49 = scmp.ne.s32.totalorder %s41, %s44
      %p50 = scmp.eq.s32.totalorder %s17, 0
      %p51 = por %p49, %p50
      %p52 = scmp.ne.s32.totalorder %s41, %s44
      %p53 = scmp.eq.s32.totalorder %s22, 1
      %p54 = por %p52, %p53
      %p55 = scmp.ne.s32.totalorder %s44, %s45
      %p56 = scmp.eq.s32.totalorder %s22, 0
      %p57 = por %p55, %p56
      %p58 = scmp.ne.s32.totalorder %s44, %s45
      %p59 = scmp.eq.s32.totalorder %s23, 1
      %p60 = por %p58, %p59
      %p62 = scmp.ne.s32.totalorder %s45, %s61
      %p63 = scmp.eq.s32.totalorder %s23, 0
      %p64 = por %p62, %p63
      %s66 = sadd.s32 %s65, 1
      %p69 = scmp.eq.s32.totalorder %s17, 1
      %p70 = scmp.ne.s32.totalorder %s65, %s67
      %p71 = scmp.eq.s32.totalorder %s17, 0
      %p72 = por %p70, %p71
      %p73 = scmp.ne.s32.totalorder %s65, %s67
      %p74 = scmp.eq.s32.totalorder %s22, 1
      %p75 = por %p73, %p74
      %p76 = scmp.ne.s32.totalorder %s67, %s68
      %p77 = scmp.eq.s32.totalorder %s22, 0
      %p78 = por %p76, %p77
      %p79 = scmp.ne.s32.totalorder %s67, %s68
      %p80 = scmp.eq.s32.totalorder %s23, 1
      %p81 = por %p79, %p80
      %p83 = scmp.ne.s32.totalorder %s68, %s82
      %p84 = scmp.eq.s32.totalorder %s23, 0
      %p85 = por %p83, %p84
      %s87 = sadd.s32 %s86, 1
      %p90 = scmp.eq.s32.totalorder %s17, 1
      %p91 = scmp.ne.s32.totalorder %s86, %s88
      %p92 = scmp.eq.s32.totalorder %s17, 0
      %p93 = por %p91, %p92
      %p94 = scmp.ne.s32.totalorder %s86, %s88
      %p95 = scmp.eq.s32.totalorder %s22, 1
      %p96 = por %p94, %p95
      %p97 = scmp.ne.s32.totalorder %s88, %s89
      %p98 = scmp.eq.s32.totalorder %s22, 0
      %p99 = por %p97, %p98
      %p100 = scmp.ne.s32.totalorder %s88, %s89
      %p101 = scmp.eq.s32.totalorder %s23, 1
      %p102 = por %p100, %p101
      %p104 = scmp.ne.s32.totalorder %s89, %s103
      %p105 = scmp.eq.s32.totalorder %s23, 0
      %p106 = por %p104, %p105
      %s107 = ssub.s32 %s24, %s36
      %s108 = ssub.s32 %s25, %s32
      %s109 = sor.u32 %s107, %s108
      %p110 = scmp.eq.s32.totalorder %s109, 0
      %s112 = sadd.s32 %s111, 1
      %s113 = scalar_select %p110, %s111, %s112
      %p116 = pneg %p110
      %p117 = scmp.eq.s32.totalorder %s17, 1
      %p118 = por %p116, %p117
      %p119 = scmp.ne.s32.totalorder %s111, %s114
      %p120 = scmp.eq.s32.totalorder %s17, 0
      %p121 = por %p119, %p120
      %p122 = scmp.ne.s32.totalorder %s111, %s114
      %p123 = scmp.eq.s32.totalorder %s22, 1
      %p124 = por %p122, %p123
      %p125 = scmp.ne.s32.totalorder %s114, %s115
      %p126 = scmp.eq.s32.totalorder %s22, 0
      %p127 = por %p125, %p126
      %p128 = scmp.ne.s32.totalorder %s114, %s115
      %p129 = scmp.eq.s32.totalorder %s23, 1
      %p130 = por %p128, %p129
      %p132 = scmp.ne.s32.totalorder %s115, %s131
      %p133 = scmp.eq.s32.totalorder %s23, 0
      %p134 = por %p132, %p133
      %p135 = scmp.le.s32.totalorder 1, %s17
      %p136 = scmp.lt.s32.totalorder %s17, 3
      %p137 = pnand %p135, %p136
      %p138 = pneg %p137
      // Predicated region
      $region9: #{tpu_custom_call.1} parent=5 // pred_check
        _
      $region10: #{tpu_custom_call.1} parent=5 // pred_check_branch
        %140 = sbr.rel (%p137) target = $region12
      $region11: #{tpu_custom_call.1} parent=5 // pred_region
        %s141 = ssub.s32 %s17, 1
        // Predicated region
        $region13: #{tpu_custom_call.1} parent=11 // pred_check
          %p142 = pneg %p78
        $region14: #{tpu_custom_call.1} parent=11 // pred_check_branch
          %144 = sbr.rel (%p142) target = $region16
        $region15: #{tpu_custom_call.1} parent=11 // pred_region
          %s146 = ssub.s32 16, 16
          %147 = vsyncadd [#allocation6], %s146
          %s149 = sshll.u32 %s1, 4
          %s150 = int_to_ptr.vmem [resolvable:$true] %s149
          %152 = dma.vmem_to_smem %s150, 16, [#allocation7], [#allocation6]
        $region16: #{tpu_custom_call.1} parent=11 // pred_fallthru
          _
        // Predicated region
        $region17: #{tpu_custom_call.1} parent=11 // pred_check
          %p153 = pneg %p99
        $region18: #{tpu_custom_call.1} parent=11 // pred_check_branch
          %155 = sbr.rel (%p153) target = $region20
        $region19: #{tpu_custom_call.1} parent=11 // pred_region
          %s157 = ssub.s32 16, 16
          %158 = vsyncadd [#allocation9], %s157
          %s160 = sshll.u32 %s2, 4
          %s161 = int_to_ptr.vmem [resolvable:$true] %s160
          %163 = dma.vmem_to_smem %s161, 16, [#allocation8], [#allocation9]
        $region20: #{tpu_custom_call.1} parent=11 // pred_fallthru
          _
      $region12: #{tpu_custom_call.1} parent=5 // pred_fallthru
        _
      %p164 = scmp.lt.s32.totalorder %s17, 2
      // Predicated region
      $region21: #{tpu_custom_call.1} parent=5 // pred_check
        %p165 = pneg %p164
      $region22: #{tpu_custom_call.1} parent=5 // pred_check_branch
        %167 = sbr.rel (%p165) target = $region24
      $region23: #{tpu_custom_call.1} parent=5 // pred_region
        // Predicated region
        $region25: #{tpu_custom_call.1} parent=23 // pred_check
          %p168 = pneg %p51
        $region26: #{tpu_custom_call.1} parent=23 // pred_check_branch
          %170 = sbr.rel (%p168) target = $region28
        $region27: #{tpu_custom_call.1} parent=23 // pred_region
          %s171 = sand.u32 %s41, 1
          %s172 = scalar_lea.sflag [#allocation4], %s171
          %s173 = sand.u32 %s41, 1
          %s174 = smul.addr %s173, 128
          %s175 = scalar_lea.vmem [#allocation3], %s174
          %s176 = smul.u32 8, %s25
          %s178 = ssub.s32 2048, 2048
          %179 = vsyncadd %s172, %s178
          %s180 = smul.addr %s176, 2
          %s181 = smul.addr %s24, 16
          %s182 = sadd.s32 %s180, %s181
          %s183 = smul.addr %s182, 128
          %s184 = scalar_lea.hbm %s0, %s183
          %s185 = sshll.u32 %s175, 4
          %s186 = int_to_ptr.vmem [resolvable:$true] %s185
          %191 = dma.hbm_to_vmem [thread:$0]  %s184, 2048, %s186, %s172, 128, 128, 8
        $region28: #{tpu_custom_call.1} parent=23 // pred_fallthru
          _
      $region24: #{tpu_custom_call.1} parent=5 // pred_fallthru
        _
      %p192 = scmp.le.s32.totalorder 1, %s17
      %p193 = scmp.lt.s32.totalorder %s17, 3
      %p194 = pnand %p192, %p193
      %p195 = pneg %p194
      // Predicated region
      $region29: #{tpu_custom_call.1} parent=5 // pred_check
        _
      $region30: #{tpu_custom_call.1} parent=5 // pred_check_branch
        %197 = sbr.rel (%p194) target = $region32
      $region31: #{tpu_custom_call.1} parent=5 // pred_region
        %s198 = ssub.s32 %s17, 1
        %s199 = sand.u32 %s44, 1
        %s200 = scalar_lea.sflag [#allocation4], %s199
        %s201 = sand.u32 %s44, 1
        %s202 = smul.addr %s201, 128
        %s203 = scalar_lea.vmem [#allocation3], %s202
        // Predicated region
        $region33: #{tpu_custom_call.1} parent=31 // pred_check
          %p204 = pneg %p57
        $region34: #{tpu_custom_call.1} parent=31 // pred_check_branch
          %206 = sbr.rel (%p204) target = $region36
        $region35: #{tpu_custom_call.1} parent=31 // pred_region
          %207 = dma.done %s200, 2048
        $region36: #{tpu_custom_call.1} parent=31 // pred_fallthru
          _
        // Predicated region
        $region37: #{tpu_custom_call.1} parent=31 // pred_check
          %p208 = pneg %p78
        $region38: #{tpu_custom_call.1} parent=31 // pred_check_branch
          %210 = sbr.rel (%p208) target = $region40
        $region39: #{tpu_custom_call.1} parent=31 // pred_region
          %211 = dma.done [#allocation6], 16
        $region40: #{tpu_custom_call.1} parent=31 // pred_fallthru
          _
        // Predicated region
        $region41: #{tpu_custom_call.1} parent=31 // pred_check
          %p212 = pneg %p99
        $region42: #{tpu_custom_call.1} parent=31 // pred_check_branch
          %214 = sbr.rel (%p212) target = $region44
        $region43: #{tpu_custom_call.1} parent=31 // pred_region
          %215 = dma.done [#allocation9], 16
        $region44: #{tpu_custom_call.1} parent=31 // pred_fallthru
          _
        %216 = sfence
        %s217 = sand.u32 %s44, 1
        %s218 = scalar_lea.sflag [#allocation4], %s217
        %s219 = sand.u32 %s44, 1
        %s220 = smul.addr %s219, 128
        %s221 = scalar_lea.vmem [#allocation3], %s220
        %p222 = pneg %p57
        %p223 = pneg %p54
        %p224 = pneg %p78
        %p225 = pneg %p75
        %p226 = pneg %p99
        %p227 = pneg %p96
        %p228 = pneg %p127
        %p229 = pneg %p124
        %s230 = sand.u32 %s114, 1
        %s231 = scalar_lea.sflag [#allocation5], %s230
        %s232 = sand.u32 %s114, 1
        %s233 = smul.addr %s232, 128
        %s234 = scalar_lea.vmem [#allocation10], %s233
        %s235 = smul.u32 8, %s27
        %s236 = smul.u32 8, %s27
        %s237 = smul.u32 %s27, 8
        %vm238 = vcmask 146432
        %239 = vst.msk [vmem:[#allocation2] sm:$0xff] %vm238, 0.0
        %240 = vst.msk [vmem:[#allocation2 + $0x8] sm:$0xff] %vm238, 0.0
        %vm241 = vcmask 140288
        %242 = vst.msk [vmem:[#allocation2 + $0x10] sm:$0x3] %vm241, 0.0
        %243 = vst.msk [vmem:[#allocation2 + $0x18] sm:$0xff] %vm238, 0.0
        %244 = vst.msk [vmem:[#allocation2 + $0x20] sm:$0xff] %vm238, 0.0
        %245 = vst.msk [vmem:[#allocation2 + $0x28] sm:$0x3] %vm241, 0.0
        %246 = vst.msk [vmem:[#allocation2 + $0x30] sm:$0xff] %vm238, 0.0
        %247 = vst.msk [vmem:[#allocation2 + $0x38] sm:$0xff] %vm238, 0.0
        %248 = vst.msk [vmem:[#allocation2 + $0x40] sm:$0x3] %vm241, 0.0
        %249 = vst.msk [vmem:[#allocation2 + $0x48] sm:$0xff] %vm238, 0.0
        %250 = vst.msk [vmem:[#allocation2 + $0x50] sm:$0xff] %vm238, 0.0
        %251 = vst.msk [vmem:[#allocation2 + $0x58] sm:$0x3] %vm241, 0.0
        %252 = vst.msk [vmem:[#allocation2 + $0x60] sm:$0xff] %vm238, 0.0
        %253 = vst.msk [vmem:[#allocation2 + $0x68] sm:$0xff] %vm238, 0.0
        %254 = vst.msk [vmem:[#allocation2 + $0x70] sm:$0x3] %vm241, 0.0
        %255 = vst.msk [vmem:[#allocation2 + $0x78] sm:$0xff] %vm238, 0.0
        %256 = vst.msk [vmem:[#allocation2 + $0x80] sm:$0xff] %vm238, 0.0
        %257 = vst.msk [vmem:[#allocation2 + $0x88] sm:$0x3] %vm241, 0.0
        %258 = vst.msk [vmem:[#allocation2 + $0x90] sm:$0xff] %vm238, 0.0
        %259 = vst.msk [vmem:[#allocation2 + $0x98] sm:$0xff] %vm238, 0.0
        %260 = vst.msk [vmem:[#allocation2 + $0xa0] sm:$0x3] %vm241, 0.0
        %261 = vst.msk [vmem:[#allocation2 + $0xa8] sm:$0xff] %vm238, 0.0
        %262 = vst.msk [vmem:[#allocation2 + $0xb0] sm:$0xff] %vm238, 0.0
        %263 = vst.msk [vmem:[#allocation2 + $0xb8] sm:$0x3] %vm241, 0.0
        %v264 = vld [vmem:[%s203] sm:$0xff]
        %v265 = vld [vmem:[%s203 + $0x8] sm:$0xff]
        %v266 = vld [vmem:[%s203 + $0x10] sm:$0xff]
        %v267 = vld [vmem:[%s203 + $0x18] sm:$0xff]
        %v268 = vld [vmem:[%s203 + $0x20] sm:$0xff]
        %v269 = vld [vmem:[%s203 + $0x28] sm:$0xff]
        %v270 = vld [vmem:[%s203 + $0x30] sm:$0xff]
        %v271 = vld [vmem:[%s203 + $0x38] sm:$0xff]
        %v272 = vld [vmem:[%s203 + $0x40] sm:$0xff]
        %v273 = vld [vmem:[%s203 + $0x48] sm:$0xff]
        %v274 = vld [vmem:[%s203 + $0x50] sm:$0xff]
        %v275 = vld [vmem:[%s203 + $0x58] sm:$0xff]
        %v276 = vld [vmem:[%s203 + $0x60] sm:$0xff]
        %v277 = vld [vmem:[%s203 + $0x68] sm:$0xff]
        %v278 = vld [vmem:[%s203 + $0x70] sm:$0xff]
        %v279 = vld [vmem:[%s203 + $0x78] sm:$0xff]
        %296 = vrot.lane.b32.xlu0 %v264, 1
        %v297 = vpop.permute.xlu0 %296
        %298 = vrot.lane.b32.xlu0 %v265, 1
        %v299 = vpop.permute.xlu0 %298
        %300 = vrot.lane.b32.xlu0 %v266, 1
        %v301 = vpop.permute.xlu0 %300
        %302 = vrot.lane.b32.xlu0 %v267, 1
        %v303 = vpop.permute.xlu0 %302
        %304 = vrot.lane.b32.xlu0 %v268, 1
        %v305 = vpop.permute.xlu0 %304
        %306 = vrot.lane.b32.xlu0 %v269, 1
        %v307 = vpop.permute.xlu0 %306
        %308 = vrot.lane.b32.xlu0 %v270, 1
        %v309 = vpop.permute.xlu0 %308
        %310 = vrot.lane.b32.xlu0 %v271, 1
        %v311 = vpop.permute.xlu0 %310
        %312 = vrot.lane.b32.xlu0 %v272, 1
        %v313 = vpop.permute.xlu0 %312
        %314 = vrot.lane.b32.xlu0 %v273, 1
        %v315 = vpop.permute.xlu0 %314
        %316 = vrot.lane.b32.xlu0 %v274, 1
        %v317 = vpop.permute.xlu0 %316
        %318 = vrot.lane.b32.xlu0 %v275, 1
        %v319 = vpop.permute.xlu0 %318
        %320 = vrot.lane.b32.xlu0 %v276, 1
        %v321 = vpop.permute.xlu0 %320
        %322 = vrot.lane.b32.xlu0 %v277, 1
        %v323 = vpop.permute.xlu0 %322
        %324 = vrot.lane.b32.xlu0 %v278, 1
        %v325 = vpop.permute.xlu0 %324
        %326 = vrot.lane.b32.xlu0 %v279, 1
        %v327 = vpop.permute.xlu0 %326
        %vm344 = vcmask 138248
        %345 = vst.msk [vmem:[#allocation2 + $0x1] sm:$0xff] %vm344, %v297
        %346 = vst.msk [vmem:[#allocation2 + $0x9] sm:$0xff] %vm344, %v299
        %347 = vst.msk [vmem:[#allocation2 + $0x19] sm:$0xff] %vm344, %v301
        %348 = vst.msk [vmem:[#allocation2 + $0x21] sm:$0xff] %vm344, %v303
        %349 = vst.msk [vmem:[#allocation2 + $0x31] sm:$0xff] %vm344, %v305
        %350 = vst.msk [vmem:[#allocation2 + $0x39] sm:$0xff] %vm344, %v307
        %351 = vst.msk [vmem:[#allocation2 + $0x49] sm:$0xff] %vm344, %v309
        %352 = vst.msk [vmem:[#allocation2 + $0x51] sm:$0xff] %vm344, %v311
        %353 = vst.msk [vmem:[#allocation2 + $0x61] sm:$0xff] %vm344, %v313
        %354 = vst.msk [vmem:[#allocation2 + $0x69] sm:$0xff] %vm344, %v315
        %355 = vst.msk [vmem:[#allocation2 + $0x79] sm:$0xff] %vm344, %v317
        %356 = vst.msk [vmem:[#allocation2 + $0x81] sm:$0xff] %vm344, %v319
        %357 = vst.msk [vmem:[#allocation2 + $0x91] sm:$0xff] %vm344, %v321
        %358 = vst.msk [vmem:[#allocation2 + $0x99] sm:$0xff] %vm344, %v323
        %359 = vst.msk [vmem:[#allocation2 + $0xa9] sm:$0xff] %vm344, %v325
        %360 = vst.msk [vmem:[#allocation2 + $0xb1] sm:$0xff] %vm344, %v327
        %s361 = sld [smem:[#allocation8 + %s237]]
        %v362 = vstv %s361
        %v363 = vld [vmem:[#allocation2] sm:$0xff]
        %v364 = vld [vmem:[#allocation2 + $0x8] sm:$0xff]
        %s365 = smul.u32 %s27, 72
        %s366 = sld [smem:[#allocation7 + %s365]]
        %v367 = vstv %s366
        %v368 = vmul.f32 %v363, %v367
        %v369 = vmul.f32 %v364, %v367
        %v370 = vadd.f32 %v362, %v368
        %v371 = vadd.f32 %v362, %v369
        %s372 = sadd.s32 %s365, 1
        %s373 = sld [smem:[#allocation7 + %s372]]
        %v374 = vstv %s373
        %v375 = vmul.f32 %v363, %v374
        %v376 = vmul.f32 %v364, %v374
        %379 = vrot.lane.b32.xlu0 %v375, 127
        %v380 = vpop.permute.xlu0 %379
        %381 = vrot.lane.b32.xlu0 %v376, 127
        %v382 = vpop.permute.xlu0 %381
        %v385 = vadd.f32 %v370, %v380
        %v386 = vadd.f32 %v371, %v382
        %s387 = sadd.s32 %s365, 2
        %s388 = sld [smem:[#allocation7 + %s387]]
        %v389 = vstv %s388
        %v390 = vmul.f32 %v363, %v389
        %v391 = vmul.f32 %v364, %v389
        %394 = vrot.lane.b32.xlu0 %v390, 126
        %v395 = vpop.permute.xlu0 %394
        %396 = vrot.lane.b32.xlu0 %v391, 126
        %v397 = vpop.permute.xlu0 %396
        %v400 = vadd.f32 %v385, %v395
        %v401 = vadd.f32 %v386, %v397
        %v402 = vld [vmem:[#allocation2 + $0x1] sm:$0xff]
        %v403 = vld [vmem:[#allocation2 + $0x9] sm:$0xff]
        %s404 = sadd.s32 %s365, 3
        %s405 = sld [smem:[#allocation7 + %s404]]
        %v406 = vstv %s405
        %v407 = vmul.f32 %v402, %v406
        %v408 = vmul.f32 %v403, %v406
        %v409 = vadd.f32 %v400, %v407
        %v410 = vadd.f32 %v401, %v408
        %s411 = sadd.s32 %s365, 4
        %s412 = sld [smem:[#allocation7 + %s411]]
        %v413 = vstv %s412
        %v414 = vmul.f32 %v402, %v413
        %v415 = vmul.f32 %v403, %v413
        %418 = vrot.lane.b32.xlu0 %v414, 127
        %v419 = vpop.permute.xlu0 %418
        %420 = vrot.lane.b32.xlu0 %v415, 127
        %v421 = vpop.permute.xlu0 %420
        %v424 = vadd.f32 %v409, %v419
        %v425 = vadd.f32 %v410, %v421
        %s426 = sadd.s32 %s365, 5
        %s427 = sld [smem:[#allocation7 + %s426]]
        %v428 = vstv %s427
        %v429 = vmul.f32 %v402, %v428
        %v430 = vmul.f32 %v403, %v428
        %433 = vrot.lane.b32.xlu0 %v429, 126
        %v434 = vpop.permute.xlu0 %433
        %435 = vrot.lane.b32.xlu0 %v430, 126
        %v436 = vpop.permute.xlu0 %435
        %v439 = vadd.f32 %v424, %v434
        %v440 = vadd.f32 %v425, %v436
        %v441 = vld [vmem:[#allocation2 + $0x2] sm:$0xff]
        %v442 = vld [vmem:[#allocation2 + $0xa] sm:$0xff]
        %s443 = sadd.s32 %s365, 6
        %s444 = sld [smem:[#allocation7 + %s443]]
        %v445 = vstv %s444
        %v446 = vmul.f32 %v441, %v445
        %v447 = vmul.f32 %v442, %v445
        %v448 = vadd.f32 %v439, %v446
        %v449 = vadd.f32 %v440, %v447
        %s450 = sadd.s32 %s365, 7
        %s451 = sld [smem:[#allocation7 + %s450]]
        %v452 = vstv %s451
        %v453 = vmul.f32 %v441, %v452
        %v454 = vmul.f32 %v442, %v452
        %457 = vrot.lane.b32.xlu0 %v453, 127
        %v458 = vpop.permute.xlu0 %457
        %459 = vrot.lane.b32.xlu0 %v454, 127
        %v460 = vpop.permute.xlu0 %459
        %v463 = vadd.f32 %v448, %v458
        %v464 = vadd.f32 %v449, %v460
        %s465 = sadd.s32 %s365, 8
        %s466 = sld [smem:[#allocation7 + %s465]]
        %v467 = vstv %s466
        %v468 = vmul.f32 %v441, %v467
        %v469 = vmul.f32 %v442, %v467
        %472 = vrot.lane.b32.xlu0 %v468, 126
        %v473 = vpop.permute.xlu0 %472
        %474 = vrot.lane.b32.xlu0 %v469, 126
        %v475 = vpop.permute.xlu0 %474
        %v478 = vadd.f32 %v463, %v473
        %v479 = vadd.f32 %v464, %v475
        %v480 = vmax.f32 %v478, 0.0
        %v481 = vmax.f32 %v479, 0.0
        %vm482 = vcmask 130048
        %483 = vst.msk [vmem:[%s234] sm:$0xff] %vm482, %v480
        %484 = vst.msk [vmem:[%s234 + $0x8] sm:$0xff] %vm482, %v481
        %s485 = sadd.s32 %s237, 1
        %s486 = sld [smem:[#allocation8 + %s485]]
        %v487 = vstv %s486
        %s488 = scalar_lea.vmem [#allocation2], 24
        %v489 = vld [vmem:[%s488] sm:$0xff]
        %v490 = vld [vmem:[%s488 + $0x8] sm:$0xff]
        %s491 = smul.u32 %s485, 9
        %s492 = sld [smem:[#allocation7 + %s491]]
        %v493 = vstv %s492
        %v494 = vmul.f32 %v489, %v493
        %v495 = vmul.f32 %v490, %v493
        %v496 = vadd.f32 %v487, %v494
        %v497 = vadd.f32 %v487, %v495
        %s498 = sadd.s32 %s491, 1
        %s499 = sld [smem:[#allocation7 + %s498]]
        %v500 = vstv %s499
        %v501 = vmul.f32 %v489, %v500
        %v502 = vmul.f32 %v490, %v500
        %505 = vrot.lane.b32.xlu0 %v501, 127
        %v506 = vpop.permute.xlu0 %505
        %507 = vrot.lane.b32.xlu0 %v502, 127
        %v508 = vpop.permute.xlu0 %507
        %v511 = vadd.f32 %v496, %v506
        %v512 = vadd.f32 %v497, %v508
        %s513 = sadd.s32 %s491, 2
        %s514 = sld [smem:[#allocation7 + %s513]]
        %v515 = vstv %s514
        %v516 = vmul.f32 %v489, %v515
        %v517 = vmul.f32 %v490, %v515
        %520 = vrot.lane.b32.xlu0 %v516, 126
        %v521 = vpop.permute.xlu0 %520
        %522 = vrot.lane.b32.xlu0 %v517, 126
        %v523 = vpop.permute.xlu0 %522
        %v526 = vadd.f32 %v511, %v521
        %v527 = vadd.f32 %v512, %v523
        %v528 = vld [vmem:[%s488 + $0x1] sm:$0xff]
        %v529 = vld [vmem:[%s488 + $0x9] sm:$0xff]
        %s530 = sadd.s32 %s491, 3
        %s531 = sld [smem:[#allocation7 + %s530]]
        %v532 = vstv %s531
        %v533 = vmul.f32 %v528, %v532
        %v534 = vmul.f32 %v529, %v532
        %v535 = vadd.f32 %v526, %v533
        %v536 = vadd.f32 %v527, %v534
        %s537 = sadd.s32 %s491, 4
        %s538 = sld [smem:[#allocation7 + %s537]]
        %v539 = vstv %s538
        %v540 = vmul.f32 %v528, %v539
        %v541 = vmul.f32 %v529, %v539
        %544 = vrot.lane.b32.xlu0 %v540, 127
        %v545 = vpop.permute.xlu0 %544
        %546 = vrot.lane.b32.xlu0 %v541, 127
        %v547 = vpop.permute.xlu0 %546
        %v550 = vadd.f32 %v535, %v545
        %v551 = vadd.f32 %v536, %v547
        %s552 = sadd.s32 %s491, 5
        %s553 = sld [smem:[#allocation7 + %s552]]
        %v554 = vstv %s553
        %v555 = vmul.f32 %v528, %v554
        %v556 = vmul.f32 %v529, %v554
        %559 = vrot.lane.b32.xlu0 %v555, 126
        %v560 = vpop.permute.xlu0 %559
        %561 = vrot.lane.b32.xlu0 %v556, 126
        %v562 = vpop.permute.xlu0 %561
        %v565 = vadd.f32 %v550, %v560
        %v566 = vadd.f32 %v551, %v562
        %v567 = vld [vmem:[%s488 + $0x2] sm:$0xff]
        %v568 = vld [vmem:[%s488 + $0xa] sm:$0xff]
        %s569 = sadd.s32 %s491, 6
        %s570 = sld [smem:[#allocation7 + %s569]]
        %v571 = vstv %s570
        %v572 = vmul.f32 %v567, %v571
        %v573 = vmul.f32 %v568, %v571
        %v574 = vadd.f32 %v565, %v572
        %v575 = vadd.f32 %v566, %v573
        %s576 = sadd.s32 %s491, 7
        %s577 = sld [smem:[#allocation7 + %s576]]
        %v578 = vstv %s577
        %v579 = vmul.f32 %v567, %v578
        %v580 = vmul.f32 %v568, %v578
        %583 = vrot.lane.b32.xlu0 %v579, 127
        %v584 = vpop.permute.xlu0 %583
        %585 = vrot.lane.b32.xlu0 %v580, 127
        %v586 = vpop.permute.xlu0 %585
        %v589 = vadd.f32 %v574, %v584
        %v590 = vadd.f32 %v575, %v586
        %s591 = sadd.s32 %s491, 8
        %s592 = sld [smem:[#allocation7 + %s591]]
        %v593 = vstv %s592
        %v594 = vmul.f32 %v567, %v593
        %v595 = vmul.f32 %v568, %v593
        %598 = vrot.lane.b32.xlu0 %v594, 126
        %v599 = vpop.permute.xlu0 %598
        %600 = vrot.lane.b32.xlu0 %v595, 126
        %v601 = vpop.permute.xlu0 %600
        %v604 = vadd.f32 %v589, %v599
        %v605 = vadd.f32 %v590, %v601
        %v606 = vmax.f32 %v604, 0.0
        %v607 = vmax.f32 %v605, 0.0
        %s608 = scalar_lea.vmem %s234, 16 [#allocation10]
        %609 = vst.msk [vmem:[%s608] sm:$0xff] %vm482, %v606
        %610 = vst.msk [vmem:[%s608 + $0x8] sm:$0xff] %vm482, %v607
        %s611 = sadd.s32 %s237, 2
        %s612 = sld [smem:[#allocation8 + %s611]]
        %v613 = vstv %s612
        %s614 = scalar_lea.vmem [#allocation2], 48
        %v615 = vld [vmem:[%s614] sm:$0xff]
        %v616 = vld [vmem:[%s614 + $0x8] sm:$0xff]
        %s617 = smul.u32 %s611, 9
        %s618 = sld [smem:[#allocation7 + %s617]]
        %v619 = vstv %s618
        %v620 = vmul.f32 %v615, %v619
        %v621 = vmul.f32 %v616, %v619
        %v622 = vadd.f32 %v613, %v620
        %v623 = vadd.f32 %v613, %v621
        %s624 = sadd.s32 %s617, 1
        %s625 = sld [smem:[#allocation7 + %s624]]
        %v626 = vstv %s625
        %v627 = vmul.f32 %v615, %v626
        %v628 = vmul.f32 %v616, %v626
        %631 = vrot.lane.b32.xlu0 %v627, 127
        %v632 = vpop.permute.xlu0 %631
        %633 = vrot.lane.b32.xlu0 %v628, 127
        %v634 = vpop.permute.xlu0 %633
        %v637 = vadd.f32 %v622, %v632
        %v638 = vadd.f32 %v623, %v634
        %s639 = sadd.s32 %s617, 2
        %s640 = sld [smem:[#allocation7 + %s639]]
        %v641 = vstv %s640
        %v642 = vmul.f32 %v615, %v641
        %v643 = vmul.f32 %v616, %v641
        %646 = vrot.lane.b32.xlu0 %v642, 126
        %v647 = vpop.permute.xlu0 %646
        %648 = vrot.lane.b32.xlu0 %v643, 126
        %v649 = vpop.permute.xlu0 %648
        %v652 = vadd.f32 %v637, %v647
        %v653 = vadd.f32 %v638, %v649
        %v654 = vld [vmem:[%s614 + $0x1] sm:$0xff]
        %v655 = vld [vmem:[%s614 + $0x9] sm:$0xff]
        %s656 = sadd.s32 %s617, 3
        %s657 = sld [smem:[#allocation7 + %s656]]
        %v658 = vstv %s657
        %v659 = vmul.f32 %v654, %v658
        %v660 = vmul.f32 %v655, %v658
        %v661 = vadd.f32 %v652, %v659
        %v662 = vadd.f32 %v653, %v660
        %s663 = sadd.s32 %s617, 4
        %s664 = sld [smem:[#allocation7 + %s663]]
        %v665 = vstv %s664
        %v666 = vmul.f32 %v654, %v665
        %v667 = vmul.f32 %v655, %v665
        %670 = vrot.lane.b32.xlu0 %v666, 127
        %v671 = vpop.permute.xlu0 %670
        %672 = vrot.lane.b32.xlu0 %v667, 127
        %v673 = vpop.permute.xlu0 %672
        %v676 = vadd.f32 %v661, %v671
        %v677 = vadd.f32 %v662, %v673
        %s678 = sadd.s32 %s617, 5
        %s679 = sld [smem:[#allocation7 + %s678]]
        %v680 = vstv %s679
        %v681 = vmul.f32 %v654, %v680
        %v682 = vmul.f32 %v655, %v680
        %685 = vrot.lane.b32.xlu0 %v681, 126
        %v686 = vpop.permute.xlu0 %685
        %687 = vrot.lane.b32.xlu0 %v682, 126
        %v688 = vpop.permute.xlu0 %687
        %v691 = vadd.f32 %v676, %v686
        %v692 = vadd.f32 %v677, %v688
        %v693 = vld [vmem:[%s614 + $0x2] sm:$0xff]
        %v694 = vld [vmem:[%s614 + $0xa] sm:$0xff]
        %s695 = sadd.s32 %s617, 6
        %s696 = sld [smem:[#allocation7 + %s695]]
        %v697 = vstv %s696
        %v698 = vmul.f32 %v693, %v697
        %v699 = vmul.f32 %v694, %v697
        %v700 = vadd.f32 %v691, %v698
        %v701 = vadd.f32 %v692, %v699
        %s702 = sadd.s32 %s617, 7
        %s703 = sld [smem:[#allocation7 + %s702]]
        %v704 = vstv %s703
        %v705 = vmul.f32 %v693, %v704
        %v706 = vmul.f32 %v694, %v704
        %709 = vrot.lane.b32.xlu0 %v705, 127
        %v710 = vpop.permute.xlu0 %709
        %711 = vrot.lane.b32.xlu0 %v706, 127
        %v712 = vpop.permute.xlu0 %711
        %v715 = vadd.f32 %v700, %v710
        %v716 = vadd.f32 %v701, %v712
        %s717 = sadd.s32 %s617, 8
        %s718 = sld [smem:[#allocation7 + %s717]]
        %v719 = vstv %s718
        %v720 = vmul.f32 %v693, %v719
        %v721 = vmul.f32 %v694, %v719
        %724 = vrot.lane.b32.xlu0 %v720, 126
        %v725 = vpop.permute.xlu0 %724
        %726 = vrot.lane.b32.xlu0 %v721, 126
        %v727 = vpop.permute.xlu0 %726
        %v730 = vadd.f32 %v715, %v725
        %v731 = vadd.f32 %v716, %v727
        %v732 = vmax.f32 %v730, 0.0
        %v733 = vmax.f32 %v731, 0.0
        %s734 = scalar_lea.vmem %s234, 32 [#allocation10]
        %735 = vst.msk [vmem:[%s734] sm:$0xff] %vm482, %v732
        %736 = vst.msk [vmem:[%s734 + $0x8] sm:$0xff] %vm482, %v733
        %s737 = sadd.s32 %s237, 3
        %s738 = sld [smem:[#allocation8 + %s737]]
        %v739 = vstv %s738
        %s740 = scalar_lea.vmem [#allocation2], 72
        %v741 = vld [vmem:[%s740] sm:$0xff]
        %v742 = vld [vmem:[%s740 + $0x8] sm:$0xff]
        %s743 = smul.u32 %s737, 9
        %s744 = sld [smem:[#allocation7 + %s743]]
        %v745 = vstv %s744
        %v746 = vmul.f32 %v741, %v745
        %v747 = vmul.f32 %v742, %v745
        %v748 = vadd.f32 %v739, %v746
        %v749 = vadd.f32 %v739, %v747
        %s750 = sadd.s32 %s743, 1
        %s751 = sld [smem:[#allocation7 + %s750]]
        %v752 = vstv %s751
        %v753 = vmul.f32 %v741, %v752
        %v754 = vmul.f32 %v742, %v752
        %757 = vrot.lane.b32.xlu0 %v753, 127
        %v758 = vpop.permute.xlu0 %757
        %759 = vrot.lane.b32.xlu0 %v754, 127
        %v760 = vpop.permute.xlu0 %759
        %v763 = vadd.f32 %v748, %v758
        %v764 = vadd.f32 %v749, %v760
        %s765 = sadd.s32 %s743, 2
        %s766 = sld [smem:[#allocation7 + %s765]]
        %v767 = vstv %s766
        %v768 = vmul.f32 %v741, %v767
        %v769 = vmul.f32 %v742, %v767
        %772 = vrot.lane.b32.xlu0 %v768, 126
        %v773 = vpop.permute.xlu0 %772
        %774 = vrot.lane.b32.xlu0 %v769, 126
        %v775 = vpop.permute.xlu0 %774
        %v778 = vadd.f32 %v763, %v773
        %v779 = vadd.f32 %v764, %v775
        %v780 = vld [vmem:[%s740 + $0x1] sm:$0xff]
        %v781 = vld [vmem:[%s740 + $0x9] sm:$0xff]
        %s782 = sadd.s32 %s743, 3
        %s783 = sld [smem:[#allocation7 + %s782]]
        %v784 = vstv %s783
        %v785 = vmul.f32 %v780, %v784
        %v786 = vmul.f32 %v781, %v784
        %v787 = vadd.f32 %v778, %v785
        %v788 = vadd.f32 %v779, %v786
        %s789 = sadd.s32 %s743, 4
        %s790 = sld [smem:[#allocation7 + %s789]]
        %v791 = vstv %s790
        %v792 = vmul.f32 %v780, %v791
        %v793 = vmul.f32 %v781, %v791
        %796 = vrot.lane.b32.xlu0 %v792, 127
        %v797 = vpop.permute.xlu0 %796
        %798 = vrot.lane.b32.xlu0 %v793, 127
        %v799 = vpop.permute.xlu0 %798
        %v802 = vadd.f32 %v787, %v797
        %v803 = vadd.f32 %v788, %v799
        %s804 = sadd.s32 %s743, 5
        %s805 = sld [smem:[#allocation7 + %s804]]
        %v806 = vstv %s805
        %v807 = vmul.f32 %v780, %v806
        %v808 = vmul.f32 %v781, %v806
        %811 = vrot.lane.b32.xlu0 %v807, 126
        %v812 = vpop.permute.xlu0 %811
        %813 = vrot.lane.b32.xlu0 %v808, 126
        %v814 = vpop.permute.xlu0 %813
        %v817 = vadd.f32 %v802, %v812
        %v818 = vadd.f32 %v803, %v814
        %v819 = vld [vmem:[%s740 + $0x2] sm:$0xff]
        %v820 = vld [vmem:[%s740 + $0xa] sm:$0xff]
        %s821 = sadd.s32 %s743, 6
        %s822 = sld [smem:[#allocation7 + %s821]]
        %v823 = vstv %s822
        %v824 = vmul.f32 %v819, %v823
        %v825 = vmul.f32 %v820, %v823
        %v826 = vadd.f32 %v817, %v824
        %v827 = vadd.f32 %v818, %v825
        %s828 = sadd.s32 %s743, 7
        %s829 = sld [smem:[#allocation7 + %s828]]
        %v830 = vstv %s829
        %v831 = vmul.f32 %v819, %v830
        %v832 = vmul.f32 %v820, %v830
        %835 = vrot.lane.b32.xlu0 %v831, 127
        %v836 = vpop.permute.xlu0 %835
        %837 = vrot.lane.b32.xlu0 %v832, 127
        %v838 = vpop.permute.xlu0 %837
        %v841 = vadd.f32 %v826, %v836
        %v842 = vadd.f32 %v827, %v838
        %s843 = sadd.s32 %s743, 8
        %s844 = sld [smem:[#allocation7 + %s843]]
        %v845 = vstv %s844
        %v846 = vmul.f32 %v819, %v845
        %v847 = vmul.f32 %v820, %v845
        %850 = vrot.lane.b32.xlu0 %v846, 126
        %v851 = vpop.permute.xlu0 %850
        %852 = vrot.lane.b32.xlu0 %v847, 126
        %v853 = vpop.permute.xlu0 %852
        %v856 = vadd.f32 %v841, %v851
        %v857 = vadd.f32 %v842, %v853
        %v858 = vmax.f32 %v856, 0.0
        %v859 = vmax.f32 %v857, 0.0
        %s860 = scalar_lea.vmem %s234, 48 [#allocation10]
        %861 = vst.msk [vmem:[%s860] sm:$0xff] %vm482, %v858
        %862 = vst.msk [vmem:[%s860 + $0x8] sm:$0xff] %vm482, %v859
        %s863 = sadd.s32 %s237, 4
        %s864 = sld [smem:[#allocation8 + %s863]]
        %v865 = vstv %s864
        %s866 = scalar_lea.vmem [#allocation2], 96
        %v867 = vld [vmem:[%s866] sm:$0xff]
        %v868 = vld [vmem:[%s866 + $0x8] sm:$0xff]
        %s869 = smul.u32 %s863, 9
        %s870 = sld [smem:[#allocation7 + %s869]]
        %v871 = vstv %s870
        %v872 = vmul.f32 %v867, %v871
        %v873 = vmul.f32 %v868, %v871
        %v874 = vadd.f32 %v865, %v872
        %v875 = vadd.f32 %v865, %v873
        %s876 = sadd.s32 %s869, 1
        %s877 = sld [smem:[#allocation7 + %s876]]
        %v878 = vstv %s877
        %v879 = vmul.f32 %v867, %v878
        %v880 = vmul.f32 %v868, %v878
        %883 = vrot.lane.b32.xlu0 %v879, 127
        %v884 = vpop.permute.xlu0 %883
        %885 = vrot.lane.b32.xlu0 %v880, 127
        %v886 = vpop.permute.xlu0 %885
        %v889 = vadd.f32 %v874, %v884
        %v890 = vadd.f32 %v875, %v886
        %s891 = sadd.s32 %s869, 2
        %s892 = sld [smem:[#allocation7 + %s891]]
        %v893 = vstv %s892
        %v894 = vmul.f32 %v867, %v893
        %v895 = vmul.f32 %v868, %v893
        %898 = vrot.lane.b32.xlu0 %v894, 126
        %v899 = vpop.permute.xlu0 %898
        %900 = vrot.lane.b32.xlu0 %v895, 126
        %v901 = vpop.permute.xlu0 %900
        %v904 = vadd.f32 %v889, %v899
        %v905 = vadd.f32 %v890, %v901
        %v906 = vld [vmem:[%s866 + $0x1] sm:$0xff]
        %v907 = vld [vmem:[%s866 + $0x9] sm:$0xff]
        %s908 = sadd.s32 %s869, 3
        %s909 = sld [smem:[#allocation7 + %s908]]
        %v910 = vstv %s909
        %v911 = vmul.f32 %v906, %v910
        %v912 = vmul.f32 %v907, %v910
        %v913 = vadd.f32 %v904, %v911
        %v914 = vadd.f32 %v905, %v912
        %s915 = sadd.s32 %s869, 4
        %s916 = sld [smem:[#allocation7 + %s915]]
        %v917 = vstv %s916
        %v918 = vmul.f32 %v906, %v917
        %v919 = vmul.f32 %v907, %v917
        %922 = vrot.lane.b32.xlu0 %v918, 127
        %v923 = vpop.permute.xlu0 %922
        %924 = vrot.lane.b32.xlu0 %v919, 127
        %v925 = vpop.permute.xlu0 %924
        %v928 = vadd.f32 %v913, %v923
        %v929 = vadd.f32 %v914, %v925
        %s930 = sadd.s32 %s869, 5
        %s931 = sld [smem:[#allocation7 + %s930]]
        %v932 = vstv %s931
        %v933 = vmul.f32 %v906, %v932
        %v934 = vmul.f32 %v907, %v932
        %937 = vrot.lane.b32.xlu0 %v933, 126
        %v938 = vpop.permute.xlu0 %937
        %939 = vrot.lane.b32.xlu0 %v934, 126
        %v940 = vpop.permute.xlu0 %939
        %v943 = vadd.f32 %v928, %v938
        %v944 = vadd.f32 %v929, %v940
        %v945 = vld [vmem:[%s866 + $0x2] sm:$0xff]
        %v946 = vld [vmem:[%s866 + $0xa] sm:$0xff]
        %s947 = sadd.s32 %s869, 6
        %s948 = sld [smem:[#allocation7 + %s947]]
        %v949 = vstv %s948
        %v950 = vmul.f32 %v945, %v949
        %v951 = vmul.f32 %v946, %v949
        %v952 = vadd.f32 %v943, %v950
        %v953 = vadd.f32 %v944, %v951
        %s954 = sadd.s32 %s869, 7
        %s955 = sld [smem:[#allocation7 + %s954]]
        %v956 = vstv %s955
        %v957 = vmul.f32 %v945, %v956
        %v958 = vmul.f32 %v946, %v956
        %961 = vrot.lane.b32.xlu0 %v957, 127
        %v962 = vpop.permute.xlu0 %961
        %963 = vrot.lane.b32.xlu0 %v958, 127
        %v964 = vpop.permute.xlu0 %963
        %v967 = vadd.f32 %v952, %v962
        %v968 = vadd.f32 %v953, %v964
        %s969 = sadd.s32 %s869, 8
        %s970 = sld [smem:[#allocation7 + %s969]]
        %v971 = vstv %s970
        %v972 = vmul.f32 %v945, %v971
        %v973 = vmul.f32 %v946, %v971
        %976 = vrot.lane.b32.xlu0 %v972, 126
        %v977 = vpop.permute.xlu0 %976
        %978 = vrot.lane.b32.xlu0 %v973, 126
        %v979 = vpop.permute.xlu0 %978
        %v982 = vadd.f32 %v967, %v977
        %v983 = vadd.f32 %v968, %v979
        %v984 = vmax.f32 %v982, 0.0
        %v985 = vmax.f32 %v983, 0.0
        %s986 = scalar_lea.vmem %s234, 64 [#allocation10]
        %987 = vst.msk [vmem:[%s986] sm:$0xff] %vm482, %v984
        %988 = vst.msk [vmem:[%s986 + $0x8] sm:$0xff] %vm482, %v985
        %s989 = sadd.s32 %s237, 5
        %s990 = sld [smem:[#allocation8 + %s989]]
        %v991 = vstv %s990
        %s992 = scalar_lea.vmem [#allocation2], 120
        %v993 = vld [vmem:[%s992] sm:$0xff]
        %v994 = vld [vmem:[%s992 + $0x8] sm:$0xff]
        %s995 = smul.u32 %s989, 9
        %s996 = sld [smem:[#allocation7 + %s995]]
        %v997 = vstv %s996
        %v998 = vmul.f32 %v993, %v997
        %v999 = vmul.f32 %v994, %v997
        %v1000 = vadd.f32 %v991, %v998
        %v1001 = vadd.f32 %v991, %v999
        %s1002 = sadd.s32 %s995, 1
        %s1003 = sld [smem:[#allocation7 + %s1002]]
        %v1004 = vstv %s1003
        %v1005 = vmul.f32 %v993, %v1004
        %v1006 = vmul.f32 %v994, %v1004
        %1009 = vrot.lane.b32.xlu0 %v1005, 127
        %v1010 = vpop.permute.xlu0 %1009
        %1011 = vrot.lane.b32.xlu0 %v1006, 127
        %v1012 = vpop.permute.xlu0 %1011
        %v1015 = vadd.f32 %v1000, %v1010
        %v1016 = vadd.f32 %v1001, %v1012
        %s1017 = sadd.s32 %s995, 2
        %s1018 = sld [smem:[#allocation7 + %s1017]]
        %v1019 = vstv %s1018
        %v1020 = vmul.f32 %v993, %v1019
        %v1021 = vmul.f32 %v994, %v1019
        %1024 = vrot.lane.b32.xlu0 %v1020, 126
        %v1025 = vpop.permute.xlu0 %1024
        %1026 = vrot.lane.b32.xlu0 %v1021, 126
        %v1027 = vpop.permute.xlu0 %1026
        %v1030 = vadd.f32 %v1015, %v1025
        %v1031 = vadd.f32 %v1016, %v1027
        %v1032 = vld [vmem:[%s992 + $0x1] sm:$0xff]
        %v1033 = vld [vmem:[%s992 + $0x9] sm:$0xff]
        %s1034 = sadd.s32 %s995, 3
        %s1035 = sld [smem:[#allocation7 + %s1034]]
        %v1036 = vstv %s1035
        %v1037 = vmul.f32 %v1032, %v1036
        %v1038 = vmul.f32 %v1033, %v1036
        %v1039 = vadd.f32 %v1030, %v1037
        %v1040 = vadd.f32 %v1031, %v1038
        %s1041 = sadd.s32 %s995, 4
        %s1042 = sld [smem:[#allocation7 + %s1041]]
        %v1043 = vstv %s1042
        %v1044 = vmul.f32 %v1032, %v1043
        %v1045 = vmul.f32 %v1033, %v1043
        %1048 = vrot.lane.b32.xlu0 %v1044, 127
        %v1049 = vpop.permute.xlu0 %1048
        %1050 = vrot.lane.b32.xlu0 %v1045, 127
        %v1051 = vpop.permute.xlu0 %1050
        %v1054 = vadd.f32 %v1039, %v1049
        %v1055 = vadd.f32 %v1040, %v1051
        %s1056 = sadd.s32 %s995, 5
        %s1057 = sld [smem:[#allocation7 + %s1056]]
        %v1058 = vstv %s1057
        %v1059 = vmul.f32 %v1032, %v1058
        %v1060 = vmul.f32 %v1033, %v1058
        %1063 = vrot.lane.b32.xlu0 %v1059, 126
        %v1064 = vpop.permute.xlu0 %1063
        %1065 = vrot.lane.b32.xlu0 %v1060, 126
        %v1066 = vpop.permute.xlu0 %1065
        %v1069 = vadd.f32 %v1054, %v1064
        %v1070 = vadd.f32 %v1055, %v1066
        %v1071 = vld [vmem:[%s992 + $0x2] sm:$0xff]
        %v1072 = vld [vmem:[%s992 + $0xa] sm:$0xff]
        %s1073 = sadd.s32 %s995, 6
        %s1074 = sld [smem:[#allocation7 + %s1073]]
        %v1075 = vstv %s1074
        %v1076 = vmul.f32 %v1071, %v1075
        %v1077 = vmul.f32 %v1072, %v1075
        %v1078 = vadd.f32 %v1069, %v1076
        %v1079 = vadd.f32 %v1070, %v1077
        %s1080 = sadd.s32 %s995, 7
        %s1081 = sld [smem:[#allocation7 + %s1080]]
        %v1082 = vstv %s1081
        %v1083 = vmul.f32 %v1071, %v1082
        %v1084 = vmul.f32 %v1072, %v1082
        %1087 = vrot.lane.b32.xlu0 %v1083, 127
        %v1088 = vpop.permute.xlu0 %1087
        %1089 = vrot.lane.b32.xlu0 %v1084, 127
        %v1090 = vpop.permute.xlu0 %1089
        %v1093 = vadd.f32 %v1078, %v1088
        %v1094 = vadd.f32 %v1079, %v1090
        %s1095 = sadd.s32 %s995, 8
        %s1096 = sld [smem:[#allocation7 + %s1095]]
        %v1097 = vstv %s1096
        %v1098 = vmul.f32 %v1071, %v1097
        %v1099 = vmul.f32 %v1072, %v1097
        %1102 = vrot.lane.b32.xlu0 %v1098, 126
        %v1103 = vpop.permute.xlu0 %1102
        %1104 = vrot.lane.b32.xlu0 %v1099, 126
        %v1105 = vpop.permute.xlu0 %1104
        %v1108 = vadd.f32 %v1093, %v1103
        %v1109 = vadd.f32 %v1094, %v1105
        %v1110 = vmax.f32 %v1108, 0.0
        %v1111 = vmax.f32 %v1109, 0.0
        %s1112 = scalar_lea.vmem %s234, 80 [#allocation10]
        %1113 = vst.msk [vmem:[%s1112] sm:$0xff] %vm482, %v1110
        %1114 = vst.msk [vmem:[%s1112 + $0x8] sm:$0xff] %vm482, %v1111
        %s1115 = sadd.s32 %s237, 6
        %s1116 = sld [smem:[#allocation8 + %s1115]]
        %v1117 = vstv %s1116
        %s1118 = scalar_lea.vmem [#allocation2], 144
        %v1119 = vld [vmem:[%s1118] sm:$0xff]
        %v1120 = vld [vmem:[%s1118 + $0x8] sm:$0xff]
        %s1121 = smul.u32 %s1115, 9
        %s1122 = sld [smem:[#allocation7 + %s1121]]
        %v1123 = vstv %s1122
        %v1124 = vmul.f32 %v1119, %v1123
        %v1125 = vmul.f32 %v1120, %v1123
        %v1126 = vadd.f32 %v1117, %v1124
        %v1127 = vadd.f32 %v1117, %v1125
        %s1128 = sadd.s32 %s1121, 1
        %s1129 = sld [smem:[#allocation7 + %s1128]]
        %v1130 = vstv %s1129
        %v1131 = vmul.f32 %v1119, %v1130
        %v1132 = vmul.f32 %v1120, %v1130
        %1135 = vrot.lane.b32.xlu0 %v1131, 127
        %v1136 = vpop.permute.xlu0 %1135
        %1137 = vrot.lane.b32.xlu0 %v1132, 127
        %v1138 = vpop.permute.xlu0 %1137
        %v1141 = vadd.f32 %v1126, %v1136
        %v1142 = vadd.f32 %v1127, %v1138
        %s1143 = sadd.s32 %s1121, 2
        %s1144 = sld [smem:[#allocation7 + %s1143]]
        %v1145 = vstv %s1144
        %v1146 = vmul.f32 %v1119, %v1145
        %v1147 = vmul.f32 %v1120, %v1145
        %1150 = vrot.lane.b32.xlu0 %v1146, 126
        %v1151 = vpop.permute.xlu0 %1150
        %1152 = vrot.lane.b32.xlu0 %v1147, 126
        %v1153 = vpop.permute.xlu0 %1152
        %v1156 = vadd.f32 %v1141, %v1151
        %v1157 = vadd.f32 %v1142, %v1153
        %v1158 = vld [vmem:[%s1118 + $0x1] sm:$0xff]
        %v1159 = vld [vmem:[%s1118 + $0x9] sm:$0xff]
        %s1160 = sadd.s32 %s1121, 3
        %s1161 = sld [smem:[#allocation7 + %s1160]]
        %v1162 = vstv %s1161
        %v1163 = vmul.f32 %v1158, %v1162
        %v1164 = vmul.f32 %v1159, %v1162
        %v1165 = vadd.f32 %v1156, %v1163
        %v1166 = vadd.f32 %v1157, %v1164
        %s1167 = sadd.s32 %s1121, 4
        %s1168 = sld [smem:[#allocation7 + %s1167]]
        %v1169 = vstv %s1168
        %v1170 = vmul.f32 %v1158, %v1169
        %v1171 = vmul.f32 %v1159, %v1169
        %1174 = vrot.lane.b32.xlu0 %v1170, 127
        %v1175 = vpop.permute.xlu0 %1174
        %1176 = vrot.lane.b32.xlu0 %v1171, 127
        %v1177 = vpop.permute.xlu0 %1176
        %v1180 = vadd.f32 %v1165, %v1175
        %v1181 = vadd.f32 %v1166, %v1177
        %s1182 = sadd.s32 %s1121, 5
        %s1183 = sld [smem:[#allocation7 + %s1182]]
        %v1184 = vstv %s1183
        %v1185 = vmul.f32 %v1158, %v1184
        %v1186 = vmul.f32 %v1159, %v1184
        %1189 = vrot.lane.b32.xlu0 %v1185, 126
        %v1190 = vpop.permute.xlu0 %1189
        %1191 = vrot.lane.b32.xlu0 %v1186, 126
        %v1192 = vpop.permute.xlu0 %1191
        %v1195 = vadd.f32 %v1180, %v1190
        %v1196 = vadd.f32 %v1181, %v1192
        %v1197 = vld [vmem:[%s1118 + $0x2] sm:$0xff]
        %v1198 = vld [vmem:[%s1118 + $0xa] sm:$0xff]
        %s1199 = sadd.s32 %s1121, 6
        %s1200 = sld [smem:[#allocation7 + %s1199]]
        %v1201 = vstv %s1200
        %v1202 = vmul.f32 %v1197, %v1201
        %v1203 = vmul.f32 %v1198, %v1201
        %v1204 = vadd.f32 %v1195, %v1202
        %v1205 = vadd.f32 %v1196, %v1203
        %s1206 = sadd.s32 %s1121, 7
        %s1207 = sld [smem:[#allocation7 + %s1206]]
        %v1208 = vstv %s1207
        %v1209 = vmul.f32 %v1197, %v1208
        %v1210 = vmul.f32 %v1198, %v1208
        %1213 = vrot.lane.b32.xlu0 %v1209, 127
        %v1214 = vpop.permute.xlu0 %1213
        %1215 = vrot.lane.b32.xlu0 %v1210, 127
        %v1216 = vpop.permute.xlu0 %1215
        %v1219 = vadd.f32 %v1204, %v1214
        %v1220 = vadd.f32 %v1205, %v1216
        %s1221 = sadd.s32 %s1121, 8
        %s1222 = sld [smem:[#allocation7 + %s1221]]
        %v1223 = vstv %s1222
        %v1224 = vmul.f32 %v1197, %v1223
        %v1225 = vmul.f32 %v1198, %v1223
        %1228 = vrot.lane.b32.xlu0 %v1224, 126
        %v1229 = vpop.permute.xlu0 %1228
        %1230 = vrot.lane.b32.xlu0 %v1225, 126
        %v1231 = vpop.permute.xlu0 %1230
        %v1234 = vadd.f32 %v1219, %v1229
        %v1235 = vadd.f32 %v1220, %v1231
        %v1236 = vmax.f32 %v1234, 0.0
        %v1237 = vmax.f32 %v1235, 0.0
        %s1238 = scalar_lea.vmem %s234, 96 [#allocation10]
        %1239 = vst.msk [vmem:[%s1238] sm:$0xff] %vm482, %v1236
        %1240 = vst.msk [vmem:[%s1238 + $0x8] sm:$0xff] %vm482, %v1237
        %s1241 = sadd.s32 %s237, 7
        %s1242 = sld [smem:[#allocation8 + %s1241]]
        %v1243 = vstv %s1242
        %s1244 = scalar_lea.vmem [#allocation2], 168
        %v1245 = vld [vmem:[%s1244] sm:$0xff]
        %v1246 = vld [vmem:[%s1244 + $0x8] sm:$0xff]
        %s1247 = smul.u32 %s1241, 9
        %s1248 = sld [smem:[#allocation7 + %s1247]]
        %v1249 = vstv %s1248
        %v1250 = vmul.f32 %v1245, %v1249
        %v1251 = vmul.f32 %v1246, %v1249
        %v1252 = vadd.f32 %v1243, %v1250
        %v1253 = vadd.f32 %v1243, %v1251
        %s1254 = sadd.s32 %s1247, 1
        %s1255 = sld [smem:[#allocation7 + %s1254]]
        %v1256 = vstv %s1255
        %v1257 = vmul.f32 %v1245, %v1256
        %v1258 = vmul.f32 %v1246, %v1256
        %1261 = vrot.lane.b32.xlu0 %v1257, 127
        %v1262 = vpop.permute.xlu0 %1261
        %1263 = vrot.lane.b32.xlu0 %v1258, 127
        %v1264 = vpop.permute.xlu0 %1263
        %v1267 = vadd.f32 %v1252, %v1262
        %v1268 = vadd.f32 %v1253, %v1264
        %s1269 = sadd.s32 %s1247, 2
        %s1270 = sld [smem:[#allocation7 + %s1269]]
        %v1271 = vstv %s1270
        %v1272 = vmul.f32 %v1245, %v1271
        %v1273 = vmul.f32 %v1246, %v1271
        %1276 = vrot.lane.b32.xlu0 %v1272, 126
        %v1277 = vpop.permute.xlu0 %1276
        %1278 = vrot.lane.b32.xlu0 %v1273, 126
        %v1279 = vpop.permute.xlu0 %1278
        %v1282 = vadd.f32 %v1267, %v1277
        %v1283 = vadd.f32 %v1268, %v1279
        %v1284 = vld [vmem:[%s1244 + $0x1] sm:$0xff]
        %v1285 = vld [vmem:[%s1244 + $0x9] sm:$0xff]
        %s1286 = sadd.s32 %s1247, 3
        %s1287 = sld [smem:[#allocation7 + %s1286]]
        %v1288 = vstv %s1287
        %v1289 = vmul.f32 %v1284, %v1288
        %v1290 = vmul.f32 %v1285, %v1288
        %v1291 = vadd.f32 %v1282, %v1289
        %v1292 = vadd.f32 %v1283, %v1290
        %s1293 = sadd.s32 %s1247, 4
        %s1294 = sld [smem:[#allocation7 + %s1293]]
        %v1295 = vstv %s1294
        %v1296 = vmul.f32 %v1284, %v1295
        %v1297 = vmul.f32 %v1285, %v1295
        %1300 = vrot.lane.b32.xlu0 %v1296, 127
        %v1301 = vpop.permute.xlu0 %1300
        %1302 = vrot.lane.b32.xlu0 %v1297, 127
        %v1303 = vpop.permute.xlu0 %1302
        %v1306 = vadd.f32 %v1291, %v1301
        %v1307 = vadd.f32 %v1292, %v1303
        %s1308 = sadd.s32 %s1247, 5
        %s1309 = sld [smem:[#allocation7 + %s1308]]
        %v1310 = vstv %s1309
        %v1311 = vmul.f32 %v1284, %v1310
        %v1312 = vmul.f32 %v1285, %v1310
        %1315 = vrot.lane.b32.xlu0 %v1311, 126
        %v1316 = vpop.permute.xlu0 %1315
        %1317 = vrot.lane.b32.xlu0 %v1312, 126
        %v1318 = vpop.permute.xlu0 %1317
        %v1321 = vadd.f32 %v1306, %v1316
        %v1322 = vadd.f32 %v1307, %v1318
        %v1323 = vld [vmem:[%s1244 + $0x2] sm:$0xff]
        %v1324 = vld [vmem:[%s1244 + $0xa] sm:$0xff]
        %s1325 = sadd.s32 %s1247, 6
        %s1326 = sld [smem:[#allocation7 + %s1325]]
        %v1327 = vstv %s1326
        %v1328 = vmul.f32 %v1323, %v1327
        %v1329 = vmul.f32 %v1324, %v1327
        %v1330 = vadd.f32 %v1321, %v1328
        %v1331 = vadd.f32 %v1322, %v1329
        %s1332 = sadd.s32 %s1247, 7
        %s1333 = sld [smem:[#allocation7 + %s1332]]
        %v1334 = vstv %s1333
        %v1335 = vmul.f32 %v1323, %v1334
        %v1336 = vmul.f32 %v1324, %v1334
        %1339 = vrot.lane.b32.xlu0 %v1335, 127
        %v1340 = vpop.permute.xlu0 %1339
        %1341 = vrot.lane.b32.xlu0 %v1336, 127
        %v1342 = vpop.permute.xlu0 %1341
        %v1345 = vadd.f32 %v1330, %v1340
        %v1346 = vadd.f32 %v1331, %v1342
        %s1347 = sadd.s32 %s1247, 8
        %s1348 = sld [smem:[#allocation7 + %s1347]]
        %v1349 = vstv %s1348
        %v1350 = vmul.f32 %v1323, %v1349
        %v1351 = vmul.f32 %v1324, %v1349
        %1354 = vrot.lane.b32.xlu0 %v1350, 126
        %v1355 = vpop.permute.xlu0 %1354
        %1356 = vrot.lane.b32.xlu0 %v1351, 126
        %v1357 = vpop.permute.xlu0 %1356
        %v1360 = vadd.f32 %v1345, %v1355
        %v1361 = vadd.f32 %v1346, %v1357
        %v1362 = vmax.f32 %v1360, 0.0
        %v1363 = vmax.f32 %v1361, 0.0
        %s1364 = scalar_lea.vmem %s234, 112 [#allocation10]
        %1365 = vst.msk [vmem:[%s1364] sm:$0xff] %vm482, %v1362
        %1366 = vst.msk [vmem:[%s1364 + $0x8] sm:$0xff] %vm482, %v1363
        %s1367 = sand.u32 %s114, 1
        %s1368 = scalar_lea.sflag [#allocation5], %s1367
        %s1369 = sand.u32 %s114, 1
        %s1370 = smul.addr %s1369, 128
        %s1371 = scalar_lea.vmem [#allocation10], %s1370
        // Predicated region
        $region45: #{tpu_custom_call.1} parent=31 // pred_check
          %p1372 = pneg %p124
        $region46: #{tpu_custom_call.1} parent=31 // pred_check_branch
          %1374 = sbr.rel (%p1372) target = $region48
        $region47: #{tpu_custom_call.1} parent=31 // pred_region
          %s1375 = smul.u32 8, %s27
          %s1377 = ssub.s32 2048, 2048
          %1378 = vsyncadd %s1368, %s1377
          %s1379 = smul.addr %s1375, 2
          %s1380 = smul.addr %s26, 16
          %s1381 = sadd.s32 %s1379, %s1380
          %s1382 = smul.addr %s1381, 128
          %s1383 = scalar_lea.hbm %s3, %s1382
          %s1384 = sshll.u32 %s1371, 4
          %s1385 = int_to_ptr.vmem [resolvable:$true] %s1384
          %1390 = dma.vmem_to_hbm [thread:$0]  %s1385, 2048, %s1383, %s1368, 128, 128, 8
        $region48: #{tpu_custom_call.1} parent=31 // pred_fallthru
          _
      $region32: #{tpu_custom_call.1} parent=5 // pred_fallthru
        _
      %p1391 = scmp.le.s32.totalorder 2, %s17
      // Predicated region
      $region49: #{tpu_custom_call.1} parent=5 // pred_check
        %p1392 = pneg %p1391
      $region50: #{tpu_custom_call.1} parent=5 // pred_check_branch
        %1394 = sbr.rel (%p1392) target = $region52
      $region51: #{tpu_custom_call.1} parent=5 // pred_region
        %s1395 = ssub.s32 %s17, 2
        // Predicated region
        $region53: #{tpu_custom_call.1} parent=51 // pred_check
          %p1396 = pneg %p130
        $region54: #{tpu_custom_call.1} parent=51 // pred_check_branch
          %1398 = sbr.rel (%p1396) target = $region56
        $region55: #{tpu_custom_call.1} parent=51 // pred_region
          %s1399 = sand.u32 %s115, 1
          %s1400 = scalar_lea.sflag [#allocation5], %s1399
          %s1401 = sand.u32 %s115, 1
          %s1402 = smul.addr %s1401, 128
          %s1403 = scalar_lea.vmem [#allocation10], %s1402
          %1404 = dma.done %s1400, 2048
        $region56: #{tpu_custom_call.1} parent=51 // pred_fallthru
          _
      $region52: #{tpu_custom_call.1} parent=5 // pred_fallthru
        _
    $region6: #{tpu_custom_call.1} parent=1 // loop_footer
      %s21 = sadd.s32 1, %s17
    $region7: #{tpu_custom_call.1} parent=1 // loop_footer_branch
      %16 = sbr.rel target = $region3
    $region8: #{tpu_custom_call.1} parent=1 // loop_exit
      _
    %1405 = vsyncpa [#allocation4], 1
    %s1406 = scalar_lea.sflag [#allocation4], 1
    %1407 = vsyncpa %s1406, 1
    %1408 = vsyncpa [#allocation5], 1
    %s1409 = scalar_lea.sflag [#allocation5], 1
    %1410 = vsyncpa %s1409, 1
    %1411 = vsyncpa [#allocation6], 1
    %s1412 = scalar_lea.sflag [#allocation6], 1
    %1413 = vsyncpa %s1412, 1
    %1414 = vsyncpa [#allocation9], 1

</llo_original>
